<compile_context>
chip_gen: v7x
topology: tpu7x:2x2x1
jax: 0.10.0
libtpu: 0.0.40
codegen_flags: <defaults>
</compile_context>

<pallas_src>
import jax
import jax.numpy as jnp
from jax.experimental import pallas as pl
from jax.experimental.pallas import tpu as pltpu

OUT_H = 384
OUT_W = 384
MAX_IMAGES_PER_STEP = 8     # upper bound on images per grid step


def _interp_matrix(in_size: int, out_size: int) -> jnp.ndarray:
    """Row-stochastic (out_size, in_size) matrix implementing 1-D bilinear
    interpolation with align_corners=True (matches PyTorch semantics)."""
    if in_size == 1:
        return jnp.ones((out_size, 1), dtype=jnp.float32)
    o = jnp.arange(out_size, dtype=jnp.float32)
    src = o * (in_size - 1) / (out_size - 1)
    i0 = jnp.clip(jnp.floor(src).astype(jnp.int32), 0, in_size - 1)
    i1 = jnp.minimum(i0 + 1, in_size - 1)
    frac = src - i0.astype(jnp.float32)
    rows = jnp.arange(out_size)
    a = jnp.zeros((out_size, in_size), dtype=jnp.float32)
    a = a.at[rows, i0].add(1.0 - frac)
    a = a.at[rows, i1].add(frac)
    return a


def _padded_bytes(shape, itemsize):
    """VMEM footprint of a block, including (8, 128) tile padding."""
    if len(shape) == 1:
        return (-(-shape[0] // 128) * 128) * itemsize
    *lead, sub, lane = shape
    sub = -(-sub // 8) * 8
    lane = -(-lane // 128) * 128
    n = 1
    for d in lead:
        n *= d
    return n * sub * lane * itemsize


def _upsample_kernel(x_ref, awt_ref, ahc_ref, b_ref, o_ref):
    # x_ref:   (nb, C*H, W)          current block of images (channels*rows flattened)
    # awt_ref: (W, 384)              column-interp matrix (lane-dense)
    # ahc_ref: (row_tile, C*H)       conv-folded row-interp tile, standard A@B orientation
    # b_ref:   (1, 1) SMEM           conv bias
    # o_ref:   (nb, 1, row_tile, 384)
    nb, ch, w = x_ref.shape
    awt = awt_ref[...]
    ahc = ahc_ref[...]
    bias = b_ref[0, 0]

    # One fused MXU matmul for all nb images of this step (sublane-only reshape).
    x_all = x_ref[...].reshape(nb * ch, w).astype(jnp.float32)
    t_all = jnp.dot(x_all, awt, preferred_element_type=jnp.float32)   # (nb*CH, 384)

    # Second contraction per image; nb is small (<= MAX_IMAGES_PER_STEP), so a
    # static unroll keeps scheduling simple while each iteration's result
    # streams straight to the output block.
    for i in range(nb):
        t = t_all[i * ch:(i + 1) * ch]                                # (CH, 384) static slice
        out = jnp.dot(ahc, t, preferred_element_type=jnp.float32)     # (row_tile, 384)
        o_ref[i, 0] = (out + bias).astype(o_ref.dtype)


def upsample_block(x, conv_w, conv_b, out_dtype=jnp.float32):
    """x: (B, C, H, W); conv_w: (1, C, 1, 1); conv_b: (1,).
    Returns (B, 1, 384, 384) in out_dtype (f32 default; bf16 halves writeback)."""
    B, C, H, W = x.shape
    CH = C * H

    w = conv_w.reshape(C).astype(jnp.float32)
    bias = conv_b.reshape(1, 1).astype(jnp.float32)

    # Conv-folded row-interp matrix Ahc: (384, C*H)  (standard lhs orientation;
    # no in-kernel transpose needed).
    ah = _interp_matrix(H, OUT_H)                                      # (384, H)
    ahc = (ah[:, None, :] * w[None, :, None]).reshape(OUT_H, CH)       # (384, C*H)
    awt = _interp_matrix(W, OUT_W).T                                   # (W, 384)

    # Contiguous NCHW -> (B, C*H, W) is a metadata-only reshape (no HBM copy).
    x_flat = x.reshape(B, CH, W)

    # --- Generation-aware VMEM budget -------------------------------------
    try:
        vmem_cap = int(pltpu.get_tpu_info().vmem_capacity_bytes)
    except Exception:
        vmem_cap = 64 << 20        # conservative (v7x per-TC physical VMEM)
    budget = vmem_cap // 2         # headroom for Mosaic internal scratch / spills

    x_item = jnp.dtype(x.dtype).itemsize
    out_item = jnp.dtype(out_dtype).itemsize

    def _step_bytes(nb, row_tile):
        xb = 2 * _padded_bytes((nb, CH, W), x_item)                    # double-buffered
        ob = 2 * _padded_bytes((nb, 1, row_tile, OUT_W), out_item)
        awb = 2 * _padded_bytes((W, OUT_W), 4)
        ahb = 2 * _padded_bytes((row_tile, CH), 4)
        # in-kernel temporaries (t_all + one out tile), single-buffered
        tmp = _padded_bytes((nb * CH, OUT_W), 4) + _padded_bytes((row_tile, OUT_W), 4)
        return xb + ob + awb + ahb + tmp

    # Images per grid step: largest count within budget (no divisor restriction;
    # pl.cdiv + Pallas boundary masking handle a partial last batch block).
    nb = 1
    for cand in range(1, min(B, MAX_IMAGES_PER_STEP) + 1):
        if _step_bytes(cand, OUT_H) <= budget:
            nb = cand

    # Keep >= 2 grid steps so v7x megacore can shard work across both TCs:
    # prefer splitting the batch (no recompute of the first matmul); only for
    # B == 1 fall back to two 192-row tiles.
    if B >= 2 and pl.cdiv(B, nb) < 2:
        nb = pl.cdiv(B, 2)
    batch_steps = pl.cdiv(B, nb)
    row_tile = OUT_H if batch_steps >= 2 else OUT_H // 2
    n_row_tiles = OUT_H // row_tile
    grid = (batch_steps, n_row_tiles)

    needed = _step_bytes(nb, row_tile)
    vmem_limit = max(needed + (8 << 20), 32 << 20)
    vmem_limit = min(vmem_limit, max(vmem_cap - (8 << 20), 32 << 20))

    return pl.pallas_call(
        _upsample_kernel,
        out_shape=jax.ShapeDtypeStruct((B, 1, OUT_H, OUT_W), out_dtype),
        grid_spec=pltpu.PrefetchScalarGridSpec(
            num_scalar_prefetch=0,
            grid=grid,
            in_specs=[
                pl.BlockSpec((nb, CH, W), lambda b, r: (b, 0, 0)),
                pl.BlockSpec((W, OUT_W), lambda b, r: (0, 0)),
                pl.BlockSpec((row_tile, CH), lambda b, r: (r, 0)),
                pl.BlockSpec(memory_space=pltpu.MemorySpace.SMEM),
            ],
            out_specs=pl.BlockSpec((nb, 1, row_tile, OUT_W),
                                   lambda b, r: (b, 0, r, 0)),
        ),
        compiler_params=pltpu.CompilerParams(
            dimension_semantics=("parallel", "parallel"),
            vmem_limit_bytes=int(vmem_limit),
        ),
    )(x_flat, awt, ahc, bias)


def _reference(x, conv_w, conv_b):
    """Pure-JAX reference for sanity checking."""
    B, C, H, W = x.shape
    y = jnp.einsum("bchw,c->bhw", x, conv_w.reshape(C)) + conv_b[0]    # (B, H, W)
    ah = _interp_matrix(H, OUT_H)
    aw = _interp_matrix(W, OUT_W)
    out = jnp.einsum("oh,bhw,pw->bop", ah, y, aw)
    return out[:, None, :, :]


if __name__ == "__main__":
    key = jax.random.PRNGKey(0)
    k_x, k_w, k_b = jax.random.split(key, 3)

    B, C, H, W = 2, 4, 16, 16            # dim = C = 4
    x = jax.random.normal(k_x, (B, C, H, W), dtype=jnp.float32)

    # deterministic synthetic Conv2d(dim, 1, 1, 1) parameters
    conv_w = jax.random.normal(k_w, (1, C, 1, 1), dtype=jnp.float32) * 0.1
    conv_b = jax.random.normal(k_b, (1,), dtype=jnp.float32) * 0.1

    out = upsample_block(x, conv_w, conv_b)
    out = jax.block_until_ready(out)

    ref = _reference(x, conv_w, conv_b)
    assert out.shape == (B, 1, OUT_H, OUT_W), out.shape
    assert jnp.allclose(out, ref, atol=1e-4, rtol=1e-4), "mismatch vs reference"

    print("KERNEL_OK")
</pallas_src>

<mosaic_0001>
module attributes {stable_mosaic.version = 11 : i64} {
  func.func @_upsample_kernel(%arg0: i32, %arg1: i32, %arg2: memref<1x64x16xf32, #tpu.memory_space<vmem>>, %arg3: memref<16x384xf32, #tpu.memory_space<vmem>>, %arg4: memref<384x64xf32, #tpu.memory_space<vmem>>, %arg5: memref<1x1xf32, #tpu.memory_space<smem>>, %arg6: memref<1x1x384x384xf32, #tpu.memory_space<vmem>>) attributes {dimension_semantics = [#tpu.dimension_semantics<parallel>, #tpu.dimension_semantics<parallel>], iteration_bounds = array<i64: 2, 1>, scalar_prefetch = 0 : i64, scratch_operands = 0 : i64, tpu.core_type = #tpu.core_type<tc>, window_params = [{transform_indices = @transform_0, window_bounds = array<i64: 1, 64, 16>}, {pipeline_mode = #tpu.pipeline_mode<synchronous>, transform_indices = @transform_1, window_bounds = array<i64: 16, 384>}, {transform_indices = @transform_2, window_bounds = array<i64: 384, 64>}, {transform_indices = @transform_3, window_bounds = array<i64: 1, 1>}, {transform_indices = @transform_4, window_bounds = array<i64: 1, 1, 384, 384>}]} {
    %c0 = arith.constant 0 : index
    %c0_0 = arith.constant 0 : index
    %0 = vector.load %arg3[%c0, %c0_0] : memref<16x384xf32, #tpu.memory_space<vmem>>, vector<16x384xf32>
    %c0_1 = arith.constant 0 : index
    %c0_2 = arith.constant 0 : index
    %1 = vector.load %arg4[%c0_1, %c0_2] : memref<384x64xf32, #tpu.memory_space<vmem>>, vector<384x64xf32>
    %c0_3 = arith.constant 0 : index
    %c0_4 = arith.constant 0 : index
    %2 = memref.load %arg5[%c0_3, %c0_4] : memref<1x1xf32, #tpu.memory_space<smem>>
    %c0_5 = arith.constant 0 : index
    %c0_6 = arith.constant 0 : index
    %c0_7 = arith.constant 0 : index
    %3 = vector.load %arg2[%c0_5, %c0_6, %c0_7] : memref<1x64x16xf32, #tpu.memory_space<vmem>>, vector<1x64x16xf32>
    %4 = vector.shape_cast %3 : vector<1x64x16xf32> to vector<64x16xf32>
    %cst = arith.constant dense<0.000000e+00> : vector<64x384xf32>
    %5 = tpu.matmul %4, %0, %cst {dimension_numbers = #tpu.dot_dimension_numbers<[1], [0], [0], [1], [0, 0, 1, 1], [], []>} : vector<64x16xf32>, vector<16x384xf32>, vector<64x384xf32> -> vector<64x384xf32>
    %cst_8 = arith.constant dense<0.000000e+00> : vector<384x384xf32>
    %6 = tpu.matmul %1, %5, %cst_8 {dimension_numbers = #tpu.dot_dimension_numbers<[1], [0], [0], [1], [0, 0, 1, 1], [], []>} : vector<384x64xf32>, vector<64x384xf32>, vector<384x384xf32> -> vector<384x384xf32>
    %7 = vector.broadcast %2 : f32 to vector<384x384xf32>
    %8 = arith.addf %6, %7 : vector<384x384xf32>
    %c0_9 = arith.constant 0 : index
    %c0_10 = arith.constant 0 : index
    %c0_11 = arith.constant 0 : index
    %c0_12 = arith.constant 0 : index
    %9 = vector.load %arg6[%c0_9, %c0_10, %c0_11, %c0_12] : memref<1x1x384x384xf32, #tpu.memory_space<vmem>>, vector<1x1x384x384xf32>
    %10 = vector.shape_cast %9 : vector<1x1x384x384xf32> to vector<384x384xf32>
    %11 = vector.shape_cast %8 : vector<384x384xf32> to vector<1x1x384x384xf32>
    tpu.vector_store %arg6[%c0_9, %c0_10, %c0_11, %c0_12], %11 {strides = array<i32>} : memref<1x1x384x384xf32, #tpu.memory_space<vmem>>, vector<1x1x384x384xf32>,
    return
  }
  func.func @transform_0(%arg0: i32, %arg1: i32) -> (i32, i32, i32) {
    %c0_i32 = arith.constant 0 : i32
    %c0_i32_0 = arith.constant 0 : i32
    %c0_i32_1 = arith.constant 0 : i32
    return %arg0, %c0_i32, %c0_i32_0 : i32, i32, i32
  }
  func.func @transform_1(%arg0: i32, %arg1: i32) -> (i32, i32) {
    %c0_i32 = arith.constant 0 : i32
    %c0_i32_0 = arith.constant 0 : i32
    %c0_i32_1 = arith.constant 0 : i32
    return %c0_i32, %c0_i32_0 : i32, i32
  }
  func.func @transform_2(%arg0: i32, %arg1: i32) -> (i32, i32) {
    %c0_i32 = arith.constant 0 : i32
    %c0_i32_0 = arith.constant 0 : i32
    return %arg1, %c0_i32 : i32, i32
  }
  func.func @transform_3(%arg0: i32, %arg1: i32) -> (i32, i32) {
    %c0_i32 = arith.constant 0 : i32
    %c0_i32_0 = arith.constant 0 : i32
    %c0_i32_1 = arith.constant 0 : i32
    return %c0_i32, %c0_i32_0 : i32, i32
  }
  func.func @transform_4(%arg0: i32, %arg1: i32) -> (i32, i32, i32, i32) {
    %c0_i32 = arith.constant 0 : i32
    %c0_i32_0 = arith.constant 0 : i32
    %c0_i32_1 = arith.constant 0 : i32
    return %arg0, %c0_i32, %arg1, %c0_i32_0 : i32, i32, i32, i32
  }
}

</mosaic_0001>

<llo_original>
// kernel: tpu_custom_call.1
$region0: #{tpu_custom_call.1}
  #allocation0 [shape = 'u32[]', space=smem, size = 0x4, offset = 0x4, fixed_abs, tag = 'smem constant byte address 0x4 - core index']
  #allocation1 [shape = 'u32[144,128]{1,0:T(1,128)}', space=vmem, size = 0x12000, scoped, tag = 'internal scratch']
  #allocation2 [shape = 'f32[1,1]{1,0:T(1,128)S(6)}', space=smem, size = 0x200, scoped, tag = 'scoped memory for tpu_custom_call.1']
  %s0 = inlined_call_operand.vmem [shape: f32[2,64,16], index: 0, kind: input, shape index: {}]
  %s1 = inlined_call_operand.hbm [shape: f32[16,384], index: 1, kind: input, shape index: {}]
  %s2 = inlined_call_operand.vmem [shape: f32[384,64], index: 2, kind: input, shape index: {}]
  %s3 = inlined_call_operand.<no memory space> [shape: f32[1,1], index: 3, kind: input, shape index: {}]
  %s4 = inlined_call_operand.hbm [shape: f32[2,1,384,384], index: 4, kind: output, shape index: {}]
  %s5 = sld [smem:[#allocation0]]
  $region53: #{tpu_custom_call.1} parent=0
    _
  %s7 = ssub.s32 1, %s5
  %s8 = scalar_select 0, %s7, %s5
  %9 = sst [smem:[#allocation2]] %s3
  $region1: #{tpu_custom_call.1} parent=0
    #allocation3 [shape = 'u8[24576]{0}', space=vmem, size = 0x6000, scoped, tag = 'input window, operand 1, single buffered']
    #allocation4 [shape = 's32[2]{0}', space=sflag, size = 0x8, scoped, tag = 'scoped memory for tpu_custom_call.1']
    #allocation5 [shape = 's32[2]{0}', space=sflag, size = 0x8, scoped, tag = 'scoped memory for tpu_custom_call.1']
    #allocation6 [shape = 'u8[1179648]{0}', space=vmem, size = 0x120000, scoped, tag = 'output window, operand 0']
    %10 = vsyncpa [#allocation4], 0
    %11 = vsyncpa [#allocation5], 0
    %s12 = scalar_lea.sflag [#allocation5], 1
    %13 = vsyncpa %s12, 0
    loop: start=0, step=1, limit=4
    $region2: #{tpu_custom_call.1} parent=1 // loop_pre_header
      _
    $region3: #{tpu_custom_call.1} parent=1 // loop_header
      %s15 = sphi 0, %s19
      %p16 = scmp.ge.s32.totalorder %s15, 4
      %s22 = sphi 0, %s34
      %s23 = sphi 0, %s30
      %s24 = sphi 0, %s22
      %s25 = sphi 0, %s23
      %s26 = sphi 0, %s24
      %s27 = sphi 0, %s25
      %s37 = sphi 0, %s39
      %s40 = sphi 0, %s37
      %s41 = sphi 0, %s40
      %s57 = sphi 0, %s41
      %s61 = sphi 0, %s61
      %s63 = sphi 0, %s61
      %s64 = sphi 0, %s63
      %s78 = sphi 0, %s64
      %s84 = sphi 0, %s86
      %s87 = sphi 0, %s84
      %s88 = sphi 0, %s87
      %s104 = sphi 0, %s88
      %s108 = sphi 0, %s108
      %s110 = sphi 0, %s108
      %s111 = sphi 0, %s110
      %s125 = sphi 0, %s111
      %s133 = sphi 0, %s135
      %s136 = sphi 0, %s133
      %s137 = sphi 0, %s136
      %s153 = sphi 0, %s137
    $region4: #{tpu_custom_call.1} parent=1 // loop_header_branch
      %18 = sbr.rel (%p16) target = $region8
    $region5: #{tpu_custom_call.1} parent=1 // loop_body
      %s20 = ssub.s32 %s15, 1
      %s21 = ssub.s32 %s15, 2
      %s28 = sadd.s32 1, %s23
      %p29 = scmp.ge.s32.totalorder %s28, 1
      %s30 = scalar_select %p29, 0, %s28
      %s31 = sadd.s32 1, %s22
      %s32 = scalar_select %p29, %s31, %s22
      %p33 = scmp.ge.s32.totalorder %s32, 2
      %s34 = scalar_select %p33, 0, %s32
      %s35 = ssub.s32 %s22, %s34
      %p36 = scmp.eq.s32.totalorder %s35, 0
      %s38 = sadd.s32 %s37, 1
      %s39 = scalar_select %p36, %s37, %s38
      %p42 = pneg %p36
      %p43 = scmp.eq.s32.totalorder %s15, 1
      %p44 = por %p42, %p43
      %p45 = scmp.ne.s32.totalorder %s37, %s40
      %p46 = scmp.eq.s32.totalorder %s15, 0
      %p47 = por %p45, %p46
      %p48 = scmp.ne.s32.totalorder %s37, %s40
      %p49 = scmp.eq.s32.totalorder %s20, 1
      %p50 = por %p48, %p49
      %p51 = scmp.ne.s32.totalorder %s40, %s41
      %p52 = scmp.eq.s32.totalorder %s20, 0
      %p53 = por %p51, %p52
      %p54 = scmp.ne.s32.totalorder %s40, %s41
      %p55 = scmp.eq.s32.totalorder %s21, 1
      %p56 = por %p54, %p55
      %p58 = scmp.ne.s32.totalorder %s41, %s57
      %p59 = scmp.eq.s32.totalorder %s21, 0
      %p60 = por %p58, %p59
      %s62 = sadd.s32 %s61, 1
      %p65 = scmp.eq.s32.totalorder %s15, 1
      %p66 = scmp.ne.s32.totalorder %s61, %s63
      %p67 = scmp.eq.s32.totalorder %s15, 0
      %p68 = por %p66, %p67
      %p69 = scmp.ne.s32.totalorder %s61, %s63
      %p70 = scmp.eq.s32.totalorder %s20, 1
      %p71 = por %p69, %p70
      %p72 = scmp.ne.s32.totalorder %s63, %s64
      %p73 = scmp.eq.s32.totalorder %s20, 0
      %p74 = por %p72, %p73
      %p75 = scmp.ne.s32.totalorder %s63, %s64
      %p76 = scmp.eq.s32.totalorder %s21, 1
      %p77 = por %p75, %p76
      %p79 = scmp.ne.s32.totalorder %s64, %s78
      %p80 = scmp.eq.s32.totalorder %s21, 0
      %p81 = por %p79, %p80
      %s82 = ssub.s32 %s23, %s30
      %p83 = scmp.eq.s32.totalorder %s82, 0
      %s85 = sadd.s32 %s84, 1
      %s86 = scalar_select %p83, %s84, %s85
      %p89 = pneg %p83
      %p90 = scmp.eq.s32.totalorder %s15, 1
      %p91 = por %p89, %p90
      %p92 = scmp.ne.s32.totalorder %s84, %s87
      %p93 = scmp.eq.s32.totalorder %s15, 0
      %p94 = por %p92, %p93
      %p95 = scmp.ne.s32.totalorder %s84, %s87
      %p96 = scmp.eq.s32.totalorder %s20, 1
      %p97 = por %p95, %p96
      %p98 = scmp.ne.s32.totalorder %s87, %s88
      %p99 = scmp.eq.s32.totalorder %s20, 0
      %p100 = por %p98, %p99
      %p101 = scmp.ne.s32.totalorder %s87, %s88
      %p102 = scmp.eq.s32.totalorder %s21, 1
      %p103 = por %p101, %p102
      %p105 = scmp.ne.s32.totalorder %s88, %s104
      %p106 = scmp.eq.s32.totalorder %s21, 0
      %p107 = por %p105, %p106
      %s109 = sadd.s32 %s108, 1
      %p112 = scmp.eq.s32.totalorder %s15, 1
      %p113 = scmp.ne.s32.totalorder %s108, %s110
      %p114 = scmp.eq.s32.totalorder %s15, 0
      %p115 = por %p113, %p114
      %p116 = scmp.ne.s32.totalorder %s108, %s110
      %p117 = scmp.eq.s32.totalorder %s20, 1
      %p118 = por %p116, %p117
      %p119 = scmp.ne.s32.totalorder %s110, %s111
      %p120 = scmp.eq.s32.totalorder %s20, 0
      %p121 = por %p119, %p120
      %p122 = scmp.ne.s32.totalorder %s110, %s111
      %p123 = scmp.eq.s32.totalorder %s21, 1
      %p124 = por %p122, %p123
      %p126 = scmp.ne.s32.totalorder %s111, %s125
      %p127 = scmp.eq.s32.totalorder %s21, 0
      %p128 = por %p126, %p127
      %s129 = ssub.s32 %s22, %s34
      %s130 = ssub.s32 %s23, %s30
      %s131 = sor.u32 %s129, %s130
      %p132 = scmp.eq.s32.totalorder %s131, 0
      %s134 = sadd.s32 %s133, 1
      %s135 = scalar_select %p132, %s133, %s134
      %p138 = pneg %p132
      %p139 = scmp.eq.s32.totalorder %s15, 1
      %p140 = por %p138, %p139
      %p141 = scmp.ne.s32.totalorder %s133, %s136
      %p142 = scmp.eq.s32.totalorder %s15, 0
      %p143 = por %p141, %p142
      %p144 = scmp.ne.s32.totalorder %s133, %s136
      %p145 = scmp.eq.s32.totalorder %s20, 1
      %p146 = por %p144, %p145
      %p147 = scmp.ne.s32.totalorder %s136, %s137
      %p148 = scmp.eq.s32.totalorder %s20, 0
      %p149 = por %p147, %p148
      %p150 = scmp.ne.s32.totalorder %s136, %s137
      %p151 = scmp.eq.s32.totalorder %s21, 1
      %p152 = por %p150, %p151
      %p154 = scmp.ne.s32.totalorder %s137, %s153
      %p155 = scmp.eq.s32.totalorder %s21, 0
      %p156 = por %p154, %p155
      %p157 = scmp.le.s32.totalorder 1, %s15
      %p158 = scmp.lt.s32.totalorder %s15, 3
      %p159 = pnand %p157, %p158
      %p160 = pneg %p159
      // Predicated region
      $region9: #{tpu_custom_call.1} parent=5 // pred_check
        _
      $region10: #{tpu_custom_call.1} parent=5 // pred_check_branch
        %162 = sbr.rel (%p159) target = $region12
      $region11: #{tpu_custom_call.1} parent=5 // pred_region
        %s163 = ssub.s32 %s15, 1
        // Predicated region
        $region13: #{tpu_custom_call.1} parent=11 // pred_check
          %p164 = pneg %p74
        $region14: #{tpu_custom_call.1} parent=11 // pred_check_branch
          %166 = sbr.rel (%p164) target = $region16
        $region15: #{tpu_custom_call.1} parent=11 // pred_region
          %s168 = ssub.s32 768, 768
          %169 = vsyncadd [#allocation4], %s168
          %s170 = sshll.u32 [#allocation3], 4
          %s171 = int_to_ptr.vmem [resolvable:$true] %s170
          %176 = dma.hbm_to_vmem [thread:$0]  %s1, 768, %s171, [#allocation4], 384, 384, 24
        $region16: #{tpu_custom_call.1} parent=11 // pred_fallthru
          _
        // Predicated region
        $region17: #{tpu_custom_call.1} parent=11 // pred_check
          %p177 = pneg %p100
        $region18: #{tpu_custom_call.1} parent=11 // pred_check_branch
          %179 = sbr.rel (%p177) target = $region20
        $region19: #{tpu_custom_call.1} parent=11 // pred_region
          %s180 = smul.u32 48, %s25
          %p181 = scmp.lt.s32.totalorder %s180, 47
          %s182 = scalar_select %p181, %s180, 47
          %s183 = smul.addr %s182, 8
          %s184 = scalar_lea.vmem %s2, %s183
          %s185 = smul.u32 48, %s25
        $region20: #{tpu_custom_call.1} parent=11 // pred_fallthru
          _
        // Predicated region
        $region21: #{tpu_custom_call.1} parent=11 // pred_check
          %p186 = pneg %p121
        $region22: #{tpu_custom_call.1} parent=11 // pred_check_branch
          %188 = sbr.rel (%p186) target = $region24
        $region23: #{tpu_custom_call.1} parent=11 // pred_region
          _
        $region24: #{tpu_custom_call.1} parent=11 // pred_fallthru
          _
      $region12: #{tpu_custom_call.1} parent=5 // pred_fallthru
        _
      %p189 = scmp.lt.s32.totalorder %s15, 2
      // Predicated region
      $region25: #{tpu_custom_call.1} parent=5 // pred_check
        %p190 = pneg %p189
      $region26: #{tpu_custom_call.1} parent=5 // pred_check_branch
        %192 = sbr.rel (%p190) target = $region28
      $region27: #{tpu_custom_call.1} parent=5 // pred_region
        // Predicated region
        $region29: #{tpu_custom_call.1} parent=27 // pred_check
          %p193 = pneg %p47
        $region30: #{tpu_custom_call.1} parent=27 // pred_check_branch
          %195 = sbr.rel (%p193) target = $region32
        $region31: #{tpu_custom_call.1} parent=27 // pred_region
          %p196 = scmp.lt.s32.totalorder %s22, 1
          %s197 = scalar_select %p196, %s22, 1
          %s198 = smul.addr %s197, 8
          %s199 = smul.addr %s198, 8
          %s200 = scalar_lea.vmem %s0, %s199
        $region32: #{tpu_custom_call.1} parent=27 // pred_fallthru
          _
      $region28: #{tpu_custom_call.1} parent=5 // pred_fallthru
        _
      %p201 = scmp.le.s32.totalorder 1, %s15
      %p202 = scmp.lt.s32.totalorder %s15, 3
      %p203 = pnand %p201, %p202
      %p204 = pneg %p203
      // Predicated region
      $region33: #{tpu_custom_call.1} parent=5 // pred_check
        _
      $region34: #{tpu_custom_call.1} parent=5 // pred_check_branch
        %206 = sbr.rel (%p203) target = $region36
      $region35: #{tpu_custom_call.1} parent=5 // pred_region
        %s207 = ssub.s32 %s15, 1
        // Predicated region
        $region37: #{tpu_custom_call.1} parent=35 // pred_check
          %p208 = pneg %p74
        $region38: #{tpu_custom_call.1} parent=35 // pred_check_branch
          %210 = sbr.rel (%p208) target = $region40
        $region39: #{tpu_custom_call.1} parent=35 // pred_region
          %211 = dma.done [#allocation4], 768
        $region40: #{tpu_custom_call.1} parent=35 // pred_fallthru
          _
        %p212 = scmp.lt.s32.totalorder %s24, 1
        %s213 = scalar_select %p212, %s24, 1
        %s214 = smul.addr %s213, 8
        %s215 = smul.addr %s214, 8
        %s216 = scalar_lea.vmem %s0, %s215
        %p217 = pneg %p53
        %p218 = pneg %p50
        %p219 = pneg %p74
        %p220 = pneg %p71
        %s221 = smul.u32 48, %s25
        %p222 = scmp.lt.s32.totalorder %s221, 47
        %s223 = scalar_select %p222, %s221, 47
        %s224 = smul.addr %s223, 8
        %s225 = scalar_lea.vmem %s2, %s224
        %p226 = pneg %p100
        %p227 = pneg %p97
        %p228 = pneg %p121
        %p229 = pneg %p118
        %p230 = pneg %p149
        %p231 = pneg %p146
        %s232 = sand.u32 %s136, 1
        %s233 = scalar_lea.sflag [#allocation5], %s232
        %s234 = sand.u32 %s136, 1
        %s235 = smul.addr %s234, 1152
        %s236 = scalar_lea.vmem [#allocation6], %s235
        %p237 = scmp.lt.s32.totalorder %s24, 1
        %s238 = scalar_select %p237, %s24, 1
        %s239 = smul.addr %s238, 8
        %s240 = smul.addr %s239, 8
        %s241 = scalar_lea.vmem %s0, %s240
        %s242 = smul.u32 48, %s25
        %p243 = scmp.lt.s32.totalorder %s242, 47
        %s244 = scalar_select %p243, %s242, 47
        %s245 = smul.addr %s244, 8
        %s246 = scalar_lea.vmem %s2, %s245
        %s247 = smul.u32 48, %s25
        %s248 = smul.u32 48, %s25
        %v249 = vld [vmem:[#allocation3] sm:$0xff]
        %v250 = vld [vmem:[#allocation3 + $0x8] sm:$0xff]
        %v251 = vld [vmem:[#allocation3 + $0x10] sm:$0xff]
        %v252 = vld [vmem:[#allocation3 + $0x18] sm:$0xff]
        %v253 = vld [vmem:[#allocation3 + $0x20] sm:$0xff]
        %v254 = vld [vmem:[#allocation3 + $0x28] sm:$0xff]
        %v255 = vld [vmem:[%s246] sm:$0xff]
        %v256 = vld [vmem:[%s246 + $0x8] sm:$0xff]
        %v257 = vld [vmem:[%s246 + $0x10] sm:$0xff]
        %v258 = vld [vmem:[%s246 + $0x18] sm:$0xff]
        %v259 = vld [vmem:[%s246 + $0x20] sm:$0xff]
        %v260 = vld [vmem:[%s246 + $0x28] sm:$0xff]
        %v261 = vld [vmem:[%s246 + $0x30] sm:$0xff]
        %v262 = vld [vmem:[%s246 + $0x38] sm:$0xff]
        %v263 = vld [vmem:[%s246 + $0x40] sm:$0xff]
        %v264 = vld [vmem:[%s246 + $0x48] sm:$0xff]
        %v265 = vld [vmem:[%s246 + $0x50] sm:$0xff]
        %v266 = vld [vmem:[%s246 + $0x58] sm:$0xff]
        %v267 = vld [vmem:[%s246 + $0x60] sm:$0xff]
        %v268 = vld [vmem:[%s246 + $0x68] sm:$0xff]
        %v269 = vld [vmem:[%s246 + $0x70] sm:$0xff]
        %v270 = vld [vmem:[%s246 + $0x78] sm:$0xff]
        %v271 = vld [vmem:[%s246 + $0x80] sm:$0xff]
        %v272 = vld [vmem:[%s246 + $0x88] sm:$0xff]
        %v273 = vld [vmem:[%s246 + $0x90] sm:$0xff]
        %v274 = vld [vmem:[%s246 + $0x98] sm:$0xff]
        %v275 = vld [vmem:[%s246 + $0xa0] sm:$0xff]
        %v276 = vld [vmem:[%s246 + $0xa8] sm:$0xff]
        %v277 = vld [vmem:[%s246 + $0xb0] sm:$0xff]
        %v278 = vld [vmem:[%s246 + $0xb8] sm:$0xff]
        %v279 = vld [vmem:[%s246 + $0xc0] sm:$0xff]
        %v280 = vld [vmem:[%s246 + $0xc8] sm:$0xff]
        %v281 = vld [vmem:[%s246 + $0xd0] sm:$0xff]
        %v282 = vld [vmem:[%s246 + $0xd8] sm:$0xff]
        %v283 = vld [vmem:[%s246 + $0xe0] sm:$0xff]
        %v284 = vld [vmem:[%s246 + $0xe8] sm:$0xff]
        %v285 = vld [vmem:[%s246 + $0xf0] sm:$0xff]
        %v286 = vld [vmem:[%s246 + $0xf8] sm:$0xff]
        %v287 = vld [vmem:[%s246 + $0x100] sm:$0xff]
        %v288 = vld [vmem:[%s246 + $0x108] sm:$0xff]
        %v289 = vld [vmem:[%s246 + $0x110] sm:$0xff]
        %v290 = vld [vmem:[%s246 + $0x118] sm:$0xff]
        %v291 = vld [vmem:[%s246 + $0x120] sm:$0xff]
        %v292 = vld [vmem:[%s246 + $0x128] sm:$0xff]
        %v293 = vld [vmem:[%s246 + $0x130] sm:$0xff]
        %v294 = vld [vmem:[%s246 + $0x138] sm:$0xff]
        %v295 = vld [vmem:[%s246 + $0x140] sm:$0xff]
        %v296 = vld [vmem:[%s246 + $0x148] sm:$0xff]
        %v297 = vld [vmem:[%s246 + $0x150] sm:$0xff]
        %v298 = vld [vmem:[%s246 + $0x158] sm:$0xff]
        %v299 = vld [vmem:[%s246 + $0x160] sm:$0xff]
        %v300 = vld [vmem:[%s246 + $0x168] sm:$0xff]
        %v301 = vld [vmem:[%s246 + $0x170] sm:$0xff]
        %v302 = vld [vmem:[%s246 + $0x178] sm:$0xff]
        %s303 = sld [smem:[#allocation2]]
        %v304 = vld [vmem:[%s241] sm:$0xff]
        %v305 = vld [vmem:[%s241 + $0x8] sm:$0xff]
        %v306 = vld [vmem:[%s241 + $0x10] sm:$0xff]
        %v307 = vld [vmem:[%s241 + $0x18] sm:$0xff]
        %v308 = vld [vmem:[%s241 + $0x20] sm:$0xff]
        %v309 = vld [vmem:[%s241 + $0x28] sm:$0xff]
        %v310 = vld [vmem:[%s241 + $0x30] sm:$0xff]
        %v311 = vld [vmem:[%s241 + $0x38] sm:$0xff]
        %vm312 = vcmask 130048
        %v314 = vsel %vm312, %v304, 0
        %v317 = vsel %vm312, %v305, 0
        %v320 = vsel %vm312, %v306, 0
        %v323 = vsel %vm312, %v307, 0
        %v326 = vsel %vm312, %v308, 0
        %v329 = vsel %vm312, %v309, 0
        %v332 = vsel %vm312, %v310, 0
        %v335 = vsel %vm312, %v311, 0
        %337 = vmatprep.subr.mxu0 %v250
        %338 = vmatpush1.msra.mxu0 %v249
        %339 = vmatprep.subr.mxu0 %v253
        %340 = vmatpush1.msra.mxu0 %v252
        %341 = vmatprep.subr.mxu0 0.0
        %342 = vmatpush1.msra.mxu0 0.0
        %343 = vmatprep.subr.mxu0 0.0
        %344 = vmatpush1.msra.mxu0 0.0
        %345 = vmatprep.subr.mxu0 0.0
        %346 = vmatpush1.msra.mxu0 0.0
        %347 = vmatprep.subr.mxu0 0.0
        %348 = vmatpush1.msra.mxu0 0.0
        %349 = vmatprep.subr.mxu0 0.0
        %350 = vmatpush1.msra.mxu0 0.0
        %351 = vmatprep.subr.mxu0 0.0
        %352 = vmatpush1.msra.mxu0 0.0
        %353 = vmatprep.subr.mxu0 0.0
        %354 = vmatpush1.msra.mxu0 0.0
        %355 = vmatprep.subr.mxu0 0.0
        %356 = vmatpush1.msra.mxu0 0.0
        %357 = vmatprep.subr.mxu0 0.0
        %358 = vmatpush1.msra.mxu0 0.0
        %359 = vmatprep.subr.mxu0 0.0
        %360 = vmatpush1.msra.mxu0 0.0
        %361 = vmatprep.subr.mxu0 0.0
        %362 = vmatpush1.msra.mxu0 0.0
        %363 = vmatprep.subr.mxu0 0.0
        %364 = vmatpush1.msra.mxu0 0.0
        %365 = vmatprep.subr.mxu0 0.0
        %366 = vmatpush1.msra.mxu0 0.0
        %367 = vmatprep.subr.mxu0 0.0
        %368 = vmatpush1.msra.mxu0 0.0
        %369 = vmatprep.subr.mxu0 0.0
        %370 = vmatpush1.msra.mxu0 0.0
        %371 = vmatprep.subr.mxu0 0.0
        %372 = vmatpush1.msra.mxu0 0.0
        %373 = vmatprep.subr.mxu0 0.0
        %374 = vmatpush1.msra.mxu0 0.0
        %375 = vmatprep.subr.mxu0 0.0
        %376 = vmatpush1.msra.mxu0 0.0
        %377 = vmatprep.subr.mxu0 0.0
        %378 = vmatpush1.msra.mxu0 0.0
        %379 = vmatprep.subr.mxu0 0.0
        %380 = vmatpush1.msra.mxu0 0.0
        %381 = vmatprep.subr.mxu0 0.0
        %382 = vmatpush1.msra.mxu0 0.0
        %383 = vmatprep.subr.mxu0 0.0
        %384 = vmatpush1.msra.mxu0 0.0
        %385 = vmatprep.subr.mxu0 0.0
        %386 = vmatpush1.msra.mxu0 0.0
        %387 = vmatprep.subr.mxu0 0.0
        %388 = vmatpush1.msra.mxu0 0.0
        %389 = vmatprep.subr.mxu0 0.0
        %390 = vmatpush1.msra.mxu0 0.0
        %391 = vmatprep.subr.mxu0 0.0
        %392 = vmatpush1.msra.mxu0 0.0
        %393 = vmatprep.subr.mxu0 0.0
        %394 = vmatpush1.msra.mxu0 0.0
        %395 = vmatprep.subr.mxu0 0.0
        %396 = vmatpush1.msra.mxu0 0.0
        %397 = vmatprep.subr.mxu0 0.0
        %398 = vmatpush1.msra.mxu0 0.0
        %399 = vmatprep.subr.mxu0 0.0
        %400 = vmatpush1.msra.mxu0 0.0
        %401 = vmatprep.mubr.f32.mxu0 0.0
        %402 = vmatmul.mubr.f32.gmra.mrb[0].mxu0 %v314
        %v403 = vpop.f32.mrb[0].mxu0
        %v404 = vadd.f32 0.0, %v403
        %v405 = vpop.f32.mrb[0].mxu0
        %v406 = vadd.f32 0.0, %v405
        %407 = vmatprep.mubr.f32.mxu0 0.0
        %408 = vmatmul.mubr.f32.gmra.mrb[0].mxu0 %v317
        %v409 = vpop.f32.mrb[0].mxu0
        %v410 = vadd.f32 0.0, %v409
        %v411 = vpop.f32.mrb[0].mxu0
        %v412 = vadd.f32 0.0, %v411
        %413 = vmatprep.mubr.f32.mxu0 0.0
        %414 = vmatmul.mubr.f32.gmra.mrb[0].mxu0 %v320
        %v415 = vpop.f32.mrb[0].mxu0
        %v416 = vadd.f32 0.0, %v415
        %v417 = vpop.f32.mrb[0].mxu0
        %v418 = vadd.f32 0.0, %v417
        %419 = vmatprep.mubr.f32.mxu0 0.0
        %420 = vmatmul.mubr.f32.gmra.mrb[0].mxu0 %v323
        %v421 = vpop.f32.mrb[0].mxu0
        %v422 = vadd.f32 0.0, %v421
        %v423 = vpop.f32.mrb[0].mxu0
        %v424 = vadd.f32 0.0, %v423
        %425 = vmatprep.mubr.f32.mxu0 0.0
        %426 = vmatmul.mubr.f32.gmra.mrb[0].mxu0 %v326
        %v427 = vpop.f32.mrb[0].mxu0
        %v428 = vadd.f32 0.0, %v427
        %v429 = vpop.f32.mrb[0].mxu0
        %v430 = vadd.f32 0.0, %v429
        %431 = vmatprep.mubr.f32.mxu0 0.0
        %432 = vmatmul.mubr.f32.gmra.mrb[0].mxu0 %v329
        %v433 = vpop.f32.mrb[0].mxu0
        %v434 = vadd.f32 0.0, %v433
        %v435 = vpop.f32.mrb[0].mxu0
        %v436 = vadd.f32 0.0, %v435
        %437 = vmatprep.mubr.f32.mxu0 0.0
        %438 = vmatmul.mubr.f32.gmra.mrb[0].mxu0 %v332
        %v439 = vpop.f32.mrb[0].mxu0
        %v440 = vadd.f32 0.0, %v439
        %v441 = vpop.f32.mrb[0].mxu0
        %v442 = vadd.f32 0.0, %v441
        %443 = vmatprep.mubr.f32.mxu0 0.0
        %444 = vmatmul.mubr.f32.gmra.mrb[0].mxu0 %v335
        %v445 = vpop.f32.mrb[0].mxu0
        %v446 = vadd.f32 0.0, %v445
        %v447 = vpop.f32.mrb[0].mxu0
        %v448 = vadd.f32 0.0, %v447
        %449 = vdwg.mxu0
        %450 = vmatprep.subr.mxu0 0.0
        %451 = vmatpush1.msra.mxu0 %v251
        %452 = vmatprep.subr.mxu0 0.0
        %453 = vmatpush1.msra.mxu0 %v254
        %454 = vmatprep.subr.mxu0 0.0
        %455 = vmatpush1.msra.mxu0 0.0
        %456 = vmatprep.subr.mxu0 0.0
        %457 = vmatpush1.msra.mxu0 0.0
        %458 = vmatprep.subr.mxu0 0.0
        %459 = vmatpush1.msra.mxu0 0.0
        %460 = vmatprep.subr.mxu0 0.0
        %461 = vmatpush1.msra.mxu0 0.0
        %462 = vmatprep.subr.mxu0 0.0
        %463 = vmatpush1.msra.mxu0 0.0
        %464 = vmatprep.subr.mxu0 0.0
        %465 = vmatpush1.msra.mxu0 0.0
        %466 = vmatprep.subr.mxu0 0.0
        %467 = vmatpush1.msra.mxu0 0.0
        %468 = vmatprep.subr.mxu0 0.0
        %469 = vmatpush1.msra.mxu0 0.0
        %470 = vmatprep.subr.mxu0 0.0
        %471 = vmatpush1.msra.mxu0 0.0
        %472 = vmatprep.subr.mxu0 0.0
        %473 = vmatpush1.msra.mxu0 0.0
        %474 = vmatprep.subr.mxu0 0.0
        %475 = vmatpush1.msra.mxu0 0.0
        %476 = vmatprep.subr.mxu0 0.0
        %477 = vmatpush1.msra.mxu0 0.0
        %478 = vmatprep.subr.mxu0 0.0
        %479 = vmatpush1.msra.mxu0 0.0
        %480 = vmatprep.subr.mxu0 0.0
        %481 = vmatpush1.msra.mxu0 0.0
        %482 = vmatprep.subr.mxu0 0.0
        %483 = vmatpush1.msra.mxu0 0.0
        %484 = vmatprep.subr.mxu0 0.0
        %485 = vmatpush1.msra.mxu0 0.0
        %486 = vmatprep.subr.mxu0 0.0
        %487 = vmatpush1.msra.mxu0 0.0
        %488 = vmatprep.subr.mxu0 0.0
        %489 = vmatpush1.msra.mxu0 0.0
        %490 = vmatprep.subr.mxu0 0.0
        %491 = vmatpush1.msra.mxu0 0.0
        %492 = vmatprep.subr.mxu0 0.0
        %493 = vmatpush1.msra.mxu0 0.0
        %494 = vmatprep.subr.mxu0 0.0
        %495 = vmatpush1.msra.mxu0 0.0
        %496 = vmatprep.subr.mxu0 0.0
        %497 = vmatpush1.msra.mxu0 0.0
        %498 = vmatprep.subr.mxu0 0.0
        %499 = vmatpush1.msra.mxu0 0.0
        %500 = vmatprep.subr.mxu0 0.0
        %501 = vmatpush1.msra.mxu0 0.0
        %502 = vmatprep.subr.mxu0 0.0
        %503 = vmatpush1.msra.mxu0 0.0
        %504 = vmatprep.subr.mxu0 0.0
        %505 = vmatpush1.msra.mxu0 0.0
        %506 = vmatprep.subr.mxu0 0.0
        %507 = vmatpush1.msra.mxu0 0.0
        %508 = vmatprep.subr.mxu0 0.0
        %509 = vmatpush1.msra.mxu0 0.0
        %510 = vmatprep.subr.mxu0 0.0
        %511 = vmatpush1.msra.mxu0 0.0
        %512 = vmatprep.subr.mxu0 0.0
        %513 = vmatpush1.msra.mxu0 0.0
        %514 = vmatprep.mubr.f32.mxu0 0.0
        %515 = vmatmul.mubr.f32.gmra.mrb[0].mxu0 %v314
        %v516 = vpop.f32.mrb[0].mxu0
        %v517 = vadd.f32 0.0, %v516
        %v518 = vpop.f32.mrb[0].mxu0
        %519 = vmatprep.mubr.f32.mxu0 0.0
        %520 = vmatmul.mubr.f32.gmra.mrb[0].mxu0 %v317
        %v521 = vpop.f32.mrb[0].mxu0
        %v522 = vadd.f32 0.0, %v521
        %v523 = vpop.f32.mrb[0].mxu0
        %524 = vmatprep.mubr.f32.mxu0 0.0
        %525 = vmatmul.mubr.f32.gmra.mrb[0].mxu0 %v320
        %v526 = vpop.f32.mrb[0].mxu0
        %v527 = vadd.f32 0.0, %v526
        %v528 = vpop.f32.mrb[0].mxu0
        %529 = vmatprep.mubr.f32.mxu0 0.0
        %530 = vmatmul.mubr.f32.gmra.mrb[0].mxu0 %v323
        %v531 = vpop.f32.mrb[0].mxu0
        %v532 = vadd.f32 0.0, %v531
        %v533 = vpop.f32.mrb[0].mxu0
        %534 = vmatprep.mubr.f32.mxu0 0.0
        %535 = vmatmul.mubr.f32.gmra.mrb[0].mxu0 %v326
        %v536 = vpop.f32.mrb[0].mxu0
        %v537 = vadd.f32 0.0, %v536
        %v538 = vpop.f32.mrb[0].mxu0
        %539 = vmatprep.mubr.f32.mxu0 0.0
        %540 = vmatmul.mubr.f32.gmra.mrb[0].mxu0 %v329
        %v541 = vpop.f32.mrb[0].mxu0
        %v542 = vadd.f32 0.0, %v541
        %v543 = vpop.f32.mrb[0].mxu0
        %544 = vmatprep.mubr.f32.mxu0 0.0
        %545 = vmatmul.mubr.f32.gmra.mrb[0].mxu0 %v332
        %v546 = vpop.f32.mrb[0].mxu0
        %v547 = vadd.f32 0.0, %v546
        %v548 = vpop.f32.mrb[0].mxu0
        %549 = vmatprep.mubr.f32.mxu0 0.0
        %550 = vmatmul.mubr.f32.gmra.mrb[0].mxu0 %v335
        %v551 = vpop.f32.mrb[0].mxu0
        %v552 = vadd.f32 0.0, %v551
        %v553 = vpop.f32.mrb[0].mxu0
        %554 = vdwg.mxu0
        %v555 = vstv %s303
        %vm556 = vcmask 523264
        %v558 = vsel %vm556, %v255, 0
        %v561 = vsel %vm556, %v256, 0
        %v564 = vsel %vm556, %v257, 0
        %v567 = vsel %vm556, %v258, 0
        %v570 = vsel %vm556, %v259, 0
        %v573 = vsel %vm556, %v260, 0
        %v576 = vsel %vm556, %v261, 0
        %v579 = vsel %vm556, %v262, 0
        %v582 = vsel %vm556, %v263, 0
        %v585 = vsel %vm556, %v264, 0
        %v588 = vsel %vm556, %v265, 0
        %v591 = vsel %vm556, %v266, 0
        %v594 = vsel %vm556, %v267, 0
        %v597 = vsel %vm556, %v268, 0
        %v600 = vsel %vm556, %v269, 0
        %v603 = vsel %vm556, %v270, 0
        %v606 = vsel %vm556, %v271, 0
        %v609 = vsel %vm556, %v272, 0
        %v612 = vsel %vm556, %v273, 0
        %v615 = vsel %vm556, %v274, 0
        %v618 = vsel %vm556, %v275, 0
        %v621 = vsel %vm556, %v276, 0
        %v624 = vsel %vm556, %v277, 0
        %v627 = vsel %vm556, %v278, 0
        %v630 = vsel %vm556, %v279, 0
        %v633 = vsel %vm556, %v280, 0
        %v636 = vsel %vm556, %v281, 0
        %v639 = vsel %vm556, %v282, 0
        %v642 = vsel %vm556, %v283, 0
        %v645 = vsel %vm556, %v284, 0
        %v648 = vsel %vm556, %v285, 0
        %v651 = vsel %vm556, %v286, 0
        %v654 = vsel %vm556, %v287, 0
        %v657 = vsel %vm556, %v288, 0
        %v660 = vsel %vm556, %v289, 0
        %v663 = vsel %vm556, %v290, 0
        %v666 = vsel %vm556, %v291, 0
        %v669 = vsel %vm556, %v292, 0
        %v672 = vsel %vm556, %v293, 0
        %v675 = vsel %vm556, %v294, 0
        %v678 = vsel %vm556, %v295, 0
        %v681 = vsel %vm556, %v296, 0
        %v684 = vsel %vm556, %v297, 0
        %v687 = vsel %vm556, %v298, 0
        %v690 = vsel %vm556, %v299, 0
        %v693 = vsel %vm556, %v300, 0
        %v696 = vsel %vm556, %v301, 0
        %v699 = vsel %vm556, %v302, 0
        %701 = vmatprep.subr.mxu0 %v406
        %702 = vmatpush1.msra.mxu0 %v404
        %703 = vmatprep.subr.mxu0 %v412
        %704 = vmatpush1.msra.mxu0 %v410
        %705 = vmatprep.subr.mxu0 %v418
        %706 = vmatpush1.msra.mxu0 %v416
        %707 = vmatprep.subr.mxu0 %v424
        %708 = vmatpush1.msra.mxu0 %v422
        %709 = vmatprep.subr.mxu0 %v430
        %710 = vmatpush1.msra.mxu0 %v428
        %711 = vmatprep.subr.mxu0 %v436
        %712 = vmatpush1.msra.mxu0 %v434
        %713 = vmatprep.subr.mxu0 %v442
        %714 = vmatpush1.msra.mxu0 %v440
        %715 = vmatprep.subr.mxu0 %v448
        %716 = vmatpush1.msra.mxu0 %v446
        %717 = vmatprep.subr.mxu0 0.0
        %718 = vmatpush1.msra.mxu0 0.0
        %719 = vmatprep.subr.mxu0 0.0
        %720 = vmatpush1.msra.mxu0 0.0
        %721 = vmatprep.subr.mxu0 0.0
        %722 = vmatpush1.msra.mxu0 0.0
        %723 = vmatprep.subr.mxu0 0.0
        %724 = vmatpush1.msra.mxu0 0.0
        %725 = vmatprep.subr.mxu0 0.0
        %726 = vmatpush1.msra.mxu0 0.0
        %727 = vmatprep.subr.mxu0 0.0
        %728 = vmatpush1.msra.mxu0 0.0
        %729 = vmatprep.subr.mxu0 0.0
        %730 = vmatpush1.msra.mxu0 0.0
        %731 = vmatprep.subr.mxu0 0.0
        %732 = vmatpush1.msra.mxu0 0.0
        %733 = vmatprep.subr.mxu0 0.0
        %734 = vmatpush1.msra.mxu0 0.0
        %735 = vmatprep.subr.mxu0 0.0
        %736 = vmatpush1.msra.mxu0 0.0
        %737 = vmatprep.subr.mxu0 0.0
        %738 = vmatpush1.msra.mxu0 0.0
        %739 = vmatprep.subr.mxu0 0.0
        %740 = vmatpush1.msra.mxu0 0.0
        %741 = vmatprep.subr.mxu0 0.0
        %742 = vmatpush1.msra.mxu0 0.0
        %743 = vmatprep.subr.mxu0 0.0
        %744 = vmatpush1.msra.mxu0 0.0
        %745 = vmatprep.subr.mxu0 0.0
        %746 = vmatpush1.msra.mxu0 0.0
        %747 = vmatprep.subr.mxu0 0.0
        %748 = vmatpush1.msra.mxu0 0.0
        %749 = vmatprep.subr.mxu0 0.0
        %750 = vmatpush1.msra.mxu0 0.0
        %751 = vmatprep.subr.mxu0 0.0
        %752 = vmatpush1.msra.mxu0 0.0
        %753 = vmatprep.subr.mxu0 0.0
        %754 = vmatpush1.msra.mxu0 0.0
        %755 = vmatprep.subr.mxu0 0.0
        %756 = vmatpush1.msra.mxu0 0.0
        %757 = vmatprep.subr.mxu0 0.0
        %758 = vmatpush1.msra.mxu0 0.0
        %759 = vmatprep.subr.mxu0 0.0
        %760 = vmatpush1.msra.mxu0 0.0
        %761 = vmatprep.subr.mxu0 0.0
        %762 = vmatpush1.msra.mxu0 0.0
        %763 = vmatprep.subr.mxu0 0.0
        %764 = vmatpush1.msra.mxu0 0.0
        %765 = vmatprep.mubr.f32.mxu0 0.0
        %766 = vmatmul.mubr.f32.gmra.mrb[0].mxu0 %v558
        %v767 = vpop.f32.mrb[0].mxu0
        %v768 = vadd.f32 %v555, %v767
        %v769 = vpop.f32.mrb[0].mxu0
        %v770 = vadd.f32 %v555, %v769
        %771 = vmatprep.mubr.f32.mxu0 0.0
        %772 = vmatmul.mubr.f32.gmra.mrb[0].mxu0 %v561
        %v773 = vpop.f32.mrb[0].mxu0
        %v774 = vadd.f32 %v555, %v773
        %v775 = vpop.f32.mrb[0].mxu0
        %v776 = vadd.f32 %v555, %v775
        %777 = vmatprep.mubr.f32.mxu0 0.0
        %778 = vmatmul.mubr.f32.gmra.mrb[0].mxu0 %v564
        %v779 = vpop.f32.mrb[0].mxu0
        %v780 = vadd.f32 %v555, %v779
        %v781 = vpop.f32.mrb[0].mxu0
        %v782 = vadd.f32 %v555, %v781
        %783 = vmatprep.mubr.f32.mxu0 0.0
        %784 = vmatmul.mubr.f32.gmra.mrb[0].mxu0 %v567
        %v785 = vpop.f32.mrb[0].mxu0
        %v786 = vadd.f32 %v555, %v785
        %v787 = vpop.f32.mrb[0].mxu0
        %v788 = vadd.f32 %v555, %v787
        %789 = vmatprep.mubr.f32.mxu0 0.0
        %790 = vmatmul.mubr.f32.gmra.mrb[0].mxu0 %v570
        %v791 = vpop.f32.mrb[0].mxu0
        %v792 = vadd.f32 %v555, %v791
        %v793 = vpop.f32.mrb[0].mxu0
        %v794 = vadd.f32 %v555, %v793
        %795 = vmatprep.mubr.f32.mxu0 0.0
        %796 = vmatmul.mubr.f32.gmra.mrb[0].mxu0 %v573
        %v797 = vpop.f32.mrb[0].mxu0
        %v798 = vadd.f32 %v555, %v797
        %v799 = vpop.f32.mrb[0].mxu0
        %v800 = vadd.f32 %v555, %v799
        %801 = vmatprep.mubr.f32.mxu0 0.0
        %802 = vmatmul.mubr.f32.gmra.mrb[0].mxu0 %v576
        %v803 = vpop.f32.mrb[0].mxu0
        %v804 = vadd.f32 %v555, %v803
        %v805 = vpop.f32.mrb[0].mxu0
        %v806 = vadd.f32 %v555, %v805
        %807 = vmatprep.mubr.f32.mxu0 0.0
        %808 = vmatmul.mubr.f32.gmra.mrb[0].mxu0 %v579
        %v809 = vpop.f32.mrb[0].mxu0
        %v810 = vadd.f32 %v555, %v809
        %v811 = vpop.f32.mrb[0].mxu0
        %v812 = vadd.f32 %v555, %v811
        %813 = vmatprep.mubr.f32.mxu0 0.0
        %814 = vmatmul.mubr.f32.gmra.mrb[0].mxu0 %v582
        %v815 = vpop.f32.mrb[0].mxu0
        %v816 = vadd.f32 %v555, %v815
        %v817 = vpop.f32.mrb[0].mxu0
        %v818 = vadd.f32 %v555, %v817
        %819 = vmatprep.mubr.f32.mxu0 0.0
        %820 = vmatmul.mubr.f32.gmra.mrb[0].mxu0 %v585
        %v821 = vpop.f32.mrb[0].mxu0
        %v822 = vadd.f32 %v555, %v821
        %v823 = vpop.f32.mrb[0].mxu0
        %v824 = vadd.f32 %v555, %v823
        %825 = vmatprep.mubr.f32.mxu0 0.0
        %826 = vmatmul.mubr.f32.gmra.mrb[0].mxu0 %v588
        %v827 = vpop.f32.mrb[0].mxu0
        %v828 = vadd.f32 %v555, %v827
        %v829 = vpop.f32.mrb[0].mxu0
        %v830 = vadd.f32 %v555, %v829
        %831 = vmatprep.mubr.f32.mxu0 0.0
        %832 = vmatmul.mubr.f32.gmra.mrb[0].mxu0 %v591
        %v833 = vpop.f32.mrb[0].mxu0
        %v834 = vadd.f32 %v555, %v833
        %v835 = vpop.f32.mrb[0].mxu0
        %v836 = vadd.f32 %v555, %v835
        %837 = vmatprep.mubr.f32.mxu0 0.0
        %838 = vmatmul.mubr.f32.gmra.mrb[0].mxu0 %v594
        %v839 = vpop.f32.mrb[0].mxu0
        %v840 = vadd.f32 %v555, %v839
        %v841 = vpop.f32.mrb[0].mxu0
        %v842 = vadd.f32 %v555, %v841
        %843 = vmatprep.mubr.f32.mxu0 0.0
        %844 = vmatmul.mubr.f32.gmra.mrb[0].mxu0 %v597
        %v845 = vpop.f32.mrb[0].mxu0
        %v846 = vadd.f32 %v555, %v845
        %v847 = vpop.f32.mrb[0].mxu0
        %v848 = vadd.f32 %v555, %v847
        %849 = vmatprep.mubr.f32.mxu0 0.0
        %850 = vmatmul.mubr.f32.gmra.mrb[0].mxu0 %v600
        %v851 = vpop.f32.mrb[0].mxu0
        %v852 = vadd.f32 %v555, %v851
        %v853 = vpop.f32.mrb[0].mxu0
        %v854 = vadd.f32 %v555, %v853
        %855 = vmatprep.mubr.f32.mxu0 0.0
        %856 = vmatmul.mubr.f32.gmra.mrb[0].mxu0 %v603
        %v857 = vpop.f32.mrb[0].mxu0
        %v858 = vadd.f32 %v555, %v857
        %v859 = vpop.f32.mrb[0].mxu0
        %v860 = vadd.f32 %v555, %v859
        %861 = vmatprep.mubr.f32.mxu0 0.0
        %862 = vmatmul.mubr.f32.gmra.mrb[0].mxu0 %v606
        %v863 = vpop.f32.mrb[0].mxu0
        %v864 = vadd.f32 %v555, %v863
        %v865 = vpop.f32.mrb[0].mxu0
        %v866 = vadd.f32 %v555, %v865
        %867 = vmatprep.mubr.f32.mxu0 0.0
        %868 = vmatmul.mubr.f32.gmra.mrb[0].mxu0 %v609
        %v869 = vpop.f32.mrb[0].mxu0
        %v870 = vadd.f32 %v555, %v869
        %v871 = vpop.f32.mrb[0].mxu0
        %v872 = vadd.f32 %v555, %v871
        %873 = vmatprep.mubr.f32.mxu0 0.0
        %874 = vmatmul.mubr.f32.gmra.mrb[0].mxu0 %v612
        %v875 = vpop.f32.mrb[0].mxu0
        %v876 = vadd.f32 %v555, %v875
        %v877 = vpop.f32.mrb[0].mxu0
        %v878 = vadd.f32 %v555, %v877
        %879 = vmatprep.mubr.f32.mxu0 0.0
        %880 = vmatmul.mubr.f32.gmra.mrb[0].mxu0 %v615
        %v881 = vpop.f32.mrb[0].mxu0
        %v882 = vadd.f32 %v555, %v881
        %v883 = vpop.f32.mrb[0].mxu0
        %v884 = vadd.f32 %v555, %v883
        %885 = vmatprep.mubr.f32.mxu0 0.0
        %886 = vmatmul.mubr.f32.gmra.mrb[0].mxu0 %v618
        %v887 = vpop.f32.mrb[0].mxu0
        %v888 = vadd.f32 %v555, %v887
        %v889 = vpop.f32.mrb[0].mxu0
        %v890 = vadd.f32 %v555, %v889
        %891 = vmatprep.mubr.f32.mxu0 0.0
        %892 = vmatmul.mubr.f32.gmra.mrb[0].mxu0 %v621
        %v893 = vpop.f32.mrb[0].mxu0
        %v894 = vadd.f32 %v555, %v893
        %v895 = vpop.f32.mrb[0].mxu0
        %v896 = vadd.f32 %v555, %v895
        %897 = vmatprep.mubr.f32.mxu0 0.0
        %898 = vmatmul.mubr.f32.gmra.mrb[0].mxu0 %v624
        %v899 = vpop.f32.mrb[0].mxu0
        %v900 = vadd.f32 %v555, %v899
        %v901 = vpop.f32.mrb[0].mxu0
        %v902 = vadd.f32 %v555, %v901
        %903 = vmatprep.mubr.f32.mxu0 0.0
        %904 = vmatmul.mubr.f32.gmra.mrb[0].mxu0 %v627
        %v905 = vpop.f32.mrb[0].mxu0
        %v906 = vadd.f32 %v555, %v905
        %v907 = vpop.f32.mrb[0].mxu0
        %v908 = vadd.f32 %v555, %v907
        %909 = vmatprep.mubr.f32.mxu0 0.0
        %910 = vmatmul.mubr.f32.gmra.mrb[0].mxu0 %v630
        %v911 = vpop.f32.mrb[0].mxu0
        %v912 = vadd.f32 %v555, %v911
        %v913 = vpop.f32.mrb[0].mxu0
        %v914 = vadd.f32 %v555, %v913
        %915 = vmatprep.mubr.f32.mxu0 0.0
        %916 = vmatmul.mubr.f32.gmra.mrb[0].mxu0 %v633
        %v917 = vpop.f32.mrb[0].mxu0
        %v918 = vadd.f32 %v555, %v917
        %v919 = vpop.f32.mrb[0].mxu0
        %v920 = vadd.f32 %v555, %v919
        %921 = vmatprep.mubr.f32.mxu0 0.0
        %922 = vmatmul.mubr.f32.gmra.mrb[0].mxu0 %v636
        %v923 = vpop.f32.mrb[0].mxu0
        %v924 = vadd.f32 %v555, %v923
        %v925 = vpop.f32.mrb[0].mxu0
        %v926 = vadd.f32 %v555, %v925
        %927 = vmatprep.mubr.f32.mxu0 0.0
        %928 = vmatmul.mubr.f32.gmra.mrb[0].mxu0 %v639
        %v929 = vpop.f32.mrb[0].mxu0
        %v930 = vadd.f32 %v555, %v929
        %v931 = vpop.f32.mrb[0].mxu0
        %v932 = vadd.f32 %v555, %v931
        %933 = vmatprep.mubr.f32.mxu0 0.0
        %934 = vmatmul.mubr.f32.gmra.mrb[0].mxu0 %v642
        %v935 = vpop.f32.mrb[0].mxu0
        %v936 = vadd.f32 %v555, %v935
        %v937 = vpop.f32.mrb[0].mxu0
        %v938 = vadd.f32 %v555, %v937
        %939 = vmatprep.mubr.f32.mxu0 0.0
        %940 = vmatmul.mubr.f32.gmra.mrb[0].mxu0 %v645
        %v941 = vpop.f32.mrb[0].mxu0
        %v942 = vadd.f32 %v555, %v941
        %v943 = vpop.f32.mrb[0].mxu0
        %v944 = vadd.f32 %v555, %v943
        %945 = vmatprep.mubr.f32.mxu0 0.0
        %946 = vmatmul.mubr.f32.gmra.mrb[0].mxu0 %v648
        %v947 = vpop.f32.mrb[0].mxu0
        %v948 = vadd.f32 %v555, %v947
        %v949 = vpop.f32.mrb[0].mxu0
        %v950 = vadd.f32 %v555, %v949
        %951 = vmatprep.mubr.f32.mxu0 0.0
        %952 = vmatmul.mubr.f32.gmra.mrb[0].mxu0 %v651
        %v953 = vpop.f32.mrb[0].mxu0
        %v954 = vadd.f32 %v555, %v953
        %v955 = vpop.f32.mrb[0].mxu0
        %v956 = vadd.f32 %v555, %v955
        %957 = vmatprep.mubr.f32.mxu0 0.0
        %958 = vmatmul.mubr.f32.gmra.mrb[0].mxu0 %v654
        %v959 = vpop.f32.mrb[0].mxu0
        %v960 = vadd.f32 %v555, %v959
        %v961 = vpop.f32.mrb[0].mxu0
        %v962 = vadd.f32 %v555, %v961
        %963 = vmatprep.mubr.f32.mxu0 0.0
        %964 = vmatmul.mubr.f32.gmra.mrb[0].mxu0 %v657
        %v965 = vpop.f32.mrb[0].mxu0
        %v966 = vadd.f32 %v555, %v965
        %v967 = vpop.f32.mrb[0].mxu0
        %v968 = vadd.f32 %v555, %v967
        %969 = vmatprep.mubr.f32.mxu0 0.0
        %970 = vmatmul.mubr.f32.gmra.mrb[0].mxu0 %v660
        %v971 = vpop.f32.mrb[0].mxu0
        %v972 = vadd.f32 %v555, %v971
        %v973 = vpop.f32.mrb[0].mxu0
        %v974 = vadd.f32 %v555, %v973
        %975 = vmatprep.mubr.f32.mxu0 0.0
        %976 = vmatmul.mubr.f32.gmra.mrb[0].mxu0 %v663
        %v977 = vpop.f32.mrb[0].mxu0
        %v978 = vadd.f32 %v555, %v977
        %v979 = vpop.f32.mrb[0].mxu0
        %v980 = vadd.f32 %v555, %v979
        %981 = vmatprep.mubr.f32.mxu0 0.0
        %982 = vmatmul.mubr.f32.gmra.mrb[0].mxu0 %v666
        %v983 = vpop.f32.mrb[0].mxu0
        %v984 = vadd.f32 %v555, %v983
        %v985 = vpop.f32.mrb[0].mxu0
        %v986 = vadd.f32 %v555, %v985
        %987 = vmatprep.mubr.f32.mxu0 0.0
        %988 = vmatmul.mubr.f32.gmra.mrb[0].mxu0 %v669
        %v989 = vpop.f32.mrb[0].mxu0
        %v990 = vadd.f32 %v555, %v989
        %v991 = vpop.f32.mrb[0].mxu0
        %v992 = vadd.f32 %v555, %v991
        %993 = vmatprep.mubr.f32.mxu0 0.0
        %994 = vmatmul.mubr.f32.gmra.mrb[0].mxu0 %v672
        %v995 = vpop.f32.mrb[0].mxu0
        %v996 = vadd.f32 %v555, %v995
        %v997 = vpop.f32.mrb[0].mxu0
        %v998 = vadd.f32 %v555, %v997
        %999 = vmatprep.mubr.f32.mxu0 0.0
        %1000 = vmatmul.mubr.f32.gmra.mrb[0].mxu0 %v675
        %v1001 = vpop.f32.mrb[0].mxu0
        %v1002 = vadd.f32 %v555, %v1001
        %v1003 = vpop.f32.mrb[0].mxu0
        %v1004 = vadd.f32 %v555, %v1003
        %1005 = vmatprep.mubr.f32.mxu0 0.0
        %1006 = vmatmul.mubr.f32.gmra.mrb[0].mxu0 %v678
        %v1007 = vpop.f32.mrb[0].mxu0
        %v1008 = vadd.f32 %v555, %v1007
        %v1009 = vpop.f32.mrb[0].mxu0
        %v1010 = vadd.f32 %v555, %v1009
        %1011 = vmatprep.mubr.f32.mxu0 0.0
        %1012 = vmatmul.mubr.f32.gmra.mrb[0].mxu0 %v681
        %v1013 = vpop.f32.mrb[0].mxu0
        %v1014 = vadd.f32 %v555, %v1013
        %v1015 = vpop.f32.mrb[0].mxu0
        %v1016 = vadd.f32 %v555, %v1015
        %1017 = vmatprep.mubr.f32.mxu0 0.0
        %1018 = vmatmul.mubr.f32.gmra.mrb[0].mxu0 %v684
        %v1019 = vpop.f32.mrb[0].mxu0
        %v1020 = vadd.f32 %v555, %v1019
        %v1021 = vpop.f32.mrb[0].mxu0
        %v1022 = vadd.f32 %v555, %v1021
        %1023 = vmatprep.mubr.f32.mxu0 0.0
        %1024 = vmatmul.mubr.f32.gmra.mrb[0].mxu0 %v687
        %v1025 = vpop.f32.mrb[0].mxu0
        %v1026 = vadd.f32 %v555, %v1025
        %v1027 = vpop.f32.mrb[0].mxu0
        %v1028 = vadd.f32 %v555, %v1027
        %1029 = vmatprep.mubr.f32.mxu0 0.0
        %1030 = vmatmul.mubr.f32.gmra.mrb[0].mxu0 %v690
        %v1031 = vpop.f32.mrb[0].mxu0
        %v1032 = vadd.f32 %v555, %v1031
        %v1033 = vpop.f32.mrb[0].mxu0
        %v1034 = vadd.f32 %v555, %v1033
        %1035 = vmatprep.mubr.f32.mxu0 0.0
        %1036 = vmatmul.mubr.f32.gmra.mrb[0].mxu0 %v693
        %v1037 = vpop.f32.mrb[0].mxu0
        %v1038 = vadd.f32 %v555, %v1037
        %v1039 = vpop.f32.mrb[0].mxu0
        %v1040 = vadd.f32 %v555, %v1039
        %1041 = vmatprep.mubr.f32.mxu0 0.0
        %1042 = vmatmul.mubr.f32.gmra.mrb[0].mxu0 %v696
        %v1043 = vpop.f32.mrb[0].mxu0
        %v1044 = vadd.f32 %v555, %v1043
        %v1045 = vpop.f32.mrb[0].mxu0
        %v1046 = vadd.f32 %v555, %v1045
        %1047 = vmatprep.mubr.f32.mxu0 0.0
        %1048 = vmatmul.mubr.f32.gmra.mrb[0].mxu0 %v699
        %v1049 = vpop.f32.mrb[0].mxu0
        %v1050 = vadd.f32 %v555, %v1049
        %v1051 = vpop.f32.mrb[0].mxu0
        %v1052 = vadd.f32 %v555, %v1051
        %1053 = vdwg.mxu0
        %1054 = vmatprep.subr.mxu0 0.0
        %1055 = vmatpush1.msra.mxu0 %v517
        %1056 = vmatprep.subr.mxu0 0.0
        %1057 = vmatpush1.msra.mxu0 %v522
        %1058 = vmatprep.subr.mxu0 0.0
        %1059 = vmatpush1.msra.mxu0 %v527
        %1060 = vmatprep.subr.mxu0 0.0
        %1061 = vmatpush1.msra.mxu0 %v532
        %1062 = vmatprep.subr.mxu0 0.0
        %1063 = vmatpush1.msra.mxu0 %v537
        %1064 = vmatprep.subr.mxu0 0.0
        %1065 = vmatpush1.msra.mxu0 %v542
        %1066 = vmatprep.subr.mxu0 0.0
        %1067 = vmatpush1.msra.mxu0 %v547
        %1068 = vmatprep.subr.mxu0 0.0
        %1069 = vmatpush1.msra.mxu0 %v552
        %1070 = vmatprep.subr.mxu0 0.0
        %1071 = vmatpush1.msra.mxu0 0.0
        %1072 = vmatprep.subr.mxu0 0.0
        %1073 = vmatpush1.msra.mxu0 0.0
        %1074 = vmatprep.subr.mxu0 0.0
        %1075 = vmatpush1.msra.mxu0 0.0
        %1076 = vmatprep.subr.mxu0 0.0
        %1077 = vmatpush1.msra.mxu0 0.0
        %1078 = vmatprep.subr.mxu0 0.0
        %1079 = vmatpush1.msra.mxu0 0.0
        %1080 = vmatprep.subr.mxu0 0.0
        %1081 = vmatpush1.msra.mxu0 0.0
        %1082 = vmatprep.subr.mxu0 0.0
        %1083 = vmatpush1.msra.mxu0 0.0
        %1084 = vmatprep.subr.mxu0 0.0
        %1085 = vmatpush1.msra.mxu0 0.0
        %1086 = vmatprep.subr.mxu0 0.0
        %1087 = vmatpush1.msra.mxu0 0.0
        %1088 = vmatprep.subr.mxu0 0.0
        %1089 = vmatpush1.msra.mxu0 0.0
        %1090 = vmatprep.subr.mxu0 0.0
        %1091 = vmatpush1.msra.mxu0 0.0
        %1092 = vmatprep.subr.mxu0 0.0
        %1093 = vmatpush1.msra.mxu0 0.0
        %1094 = vmatprep.subr.mxu0 0.0
        %1095 = vmatpush1.msra.mxu0 0.0
        %1096 = vmatprep.subr.mxu0 0.0
        %1097 = vmatpush1.msra.mxu0 0.0
        %1098 = vmatprep.subr.mxu0 0.0
        %1099 = vmatpush1.msra.mxu0 0.0
        %1100 = vmatprep.subr.mxu0 0.0
        %1101 = vmatpush1.msra.mxu0 0.0
        %1102 = vmatprep.subr.mxu0 0.0
        %1103 = vmatpush1.msra.mxu0 0.0
        %1104 = vmatprep.subr.mxu0 0.0
        %1105 = vmatpush1.msra.mxu0 0.0
        %1106 = vmatprep.subr.mxu0 0.0
        %1107 = vmatpush1.msra.mxu0 0.0
        %1108 = vmatprep.subr.mxu0 0.0
        %1109 = vmatpush1.msra.mxu0 0.0
        %1110 = vmatprep.subr.mxu0 0.0
        %1111 = vmatpush1.msra.mxu0 0.0
        %1112 = vmatprep.subr.mxu0 0.0
        %1113 = vmatpush1.msra.mxu0 0.0
        %1114 = vmatprep.subr.mxu0 0.0
        %1115 = vmatpush1.msra.mxu0 0.0
        %1116 = vmatprep.subr.mxu0 0.0
        %1117 = vmatpush1.msra.mxu0 0.0
        %1118 = vmatprep.mubr.f32.mxu0 0.0
        %1119 = vmatmul.mubr.f32.gmra.mrb[0].mxu0 %v558
        %v1120 = vpop.f32.mrb[0].mxu0
        %v1121 = vadd.f32 %v555, %v1120
        %v1122 = vpop.f32.mrb[0].mxu0
        %1123 = vmatprep.mubr.f32.mxu0 0.0
        %1124 = vmatmul.mubr.f32.gmra.mrb[0].mxu0 %v561
        %v1125 = vpop.f32.mrb[0].mxu0
        %v1126 = vadd.f32 %v555, %v1125
        %v1127 = vpop.f32.mrb[0].mxu0
        %1128 = vmatprep.mubr.f32.mxu0 0.0
        %1129 = vmatmul.mubr.f32.gmra.mrb[0].mxu0 %v564
        %v1130 = vpop.f32.mrb[0].mxu0
        %v1131 = vadd.f32 %v555, %v1130
        %v1132 = vpop.f32.mrb[0].mxu0
        %1133 = vmatprep.mubr.f32.mxu0 0.0
        %1134 = vmatmul.mubr.f32.gmra.mrb[0].mxu0 %v567
        %v1135 = vpop.f32.mrb[0].mxu0
        %v1136 = vadd.f32 %v555, %v1135
        %v1137 = vpop.f32.mrb[0].mxu0
        %1138 = vmatprep.mubr.f32.mxu0 0.0
        %1139 = vmatmul.mubr.f32.gmra.mrb[0].mxu0 %v570
        %v1140 = vpop.f32.mrb[0].mxu0
        %v1141 = vadd.f32 %v555, %v1140
        %v1142 = vpop.f32.mrb[0].mxu0
        %1143 = vmatprep.mubr.f32.mxu0 0.0
        %1144 = vmatmul.mubr.f32.gmra.mrb[0].mxu0 %v573
        %v1145 = vpop.f32.mrb[0].mxu0
        %v1146 = vadd.f32 %v555, %v1145
        %v1147 = vpop.f32.mrb[0].mxu0
        %1148 = vmatprep.mubr.f32.mxu0 0.0
        %1149 = vmatmul.mubr.f32.gmra.mrb[0].mxu0 %v576
        %v1150 = vpop.f32.mrb[0].mxu0
        %v1151 = vadd.f32 %v555, %v1150
        %v1152 = vpop.f32.mrb[0].mxu0
        %1153 = vmatprep.mubr.f32.mxu0 0.0
        %1154 = vmatmul.mubr.f32.gmra.mrb[0].mxu0 %v579
        %v1155 = vpop.f32.mrb[0].mxu0
        %v1156 = vadd.f32 %v555, %v1155
        %v1157 = vpop.f32.mrb[0].mxu0
        %1158 = vmatprep.mubr.f32.mxu0 0.0
        %1159 = vmatmul.mubr.f32.gmra.mrb[0].mxu0 %v582
        %v1160 = vpop.f32.mrb[0].mxu0
        %v1161 = vadd.f32 %v555, %v1160
        %v1162 = vpop.f32.mrb[0].mxu0
        %1163 = vmatprep.mubr.f32.mxu0 0.0
        %1164 = vmatmul.mubr.f32.gmra.mrb[0].mxu0 %v585
        %v1165 = vpop.f32.mrb[0].mxu0
        %v1166 = vadd.f32 %v555, %v1165
        %v1167 = vpop.f32.mrb[0].mxu0
        %1168 = vmatprep.mubr.f32.mxu0 0.0
        %1169 = vmatmul.mubr.f32.gmra.mrb[0].mxu0 %v588
        %v1170 = vpop.f32.mrb[0].mxu0
        %v1171 = vadd.f32 %v555, %v1170
        %v1172 = vpop.f32.mrb[0].mxu0
        %1173 = vmatprep.mubr.f32.mxu0 0.0
        %1174 = vmatmul.mubr.f32.gmra.mrb[0].mxu0 %v591
        %v1175 = vpop.f32.mrb[0].mxu0
        %v1176 = vadd.f32 %v555, %v1175
        %v1177 = vpop.f32.mrb[0].mxu0
        %1178 = vmatprep.mubr.f32.mxu0 0.0
        %1179 = vmatmul.mubr.f32.gmra.mrb[0].mxu0 %v594
        %v1180 = vpop.f32.mrb[0].mxu0
        %v1181 = vadd.f32 %v555, %v1180
        %v1182 = vpop.f32.mrb[0].mxu0
        %1183 = vmatprep.mubr.f32.mxu0 0.0
        %1184 = vmatmul.mubr.f32.gmra.mrb[0].mxu0 %v597
        %v1185 = vpop.f32.mrb[0].mxu0
        %v1186 = vadd.f32 %v555, %v1185
        %v1187 = vpop.f32.mrb[0].mxu0
        %1188 = vmatprep.mubr.f32.mxu0 0.0
        %1189 = vmatmul.mubr.f32.gmra.mrb[0].mxu0 %v600
        %v1190 = vpop.f32.mrb[0].mxu0
        %v1191 = vadd.f32 %v555, %v1190
        %v1192 = vpop.f32.mrb[0].mxu0
        %1193 = vmatprep.mubr.f32.mxu0 0.0
        %1194 = vmatmul.mubr.f32.gmra.mrb[0].mxu0 %v603
        %v1195 = vpop.f32.mrb[0].mxu0
        %v1196 = vadd.f32 %v555, %v1195
        %v1197 = vpop.f32.mrb[0].mxu0
        %1198 = vmatprep.mubr.f32.mxu0 0.0
        %1199 = vmatmul.mubr.f32.gmra.mrb[0].mxu0 %v606
        %v1200 = vpop.f32.mrb[0].mxu0
        %v1201 = vadd.f32 %v555, %v1200
        %v1202 = vpop.f32.mrb[0].mxu0
        %1203 = vmatprep.mubr.f32.mxu0 0.0
        %1204 = vmatmul.mubr.f32.gmra.mrb[0].mxu0 %v609
        %v1205 = vpop.f32.mrb[0].mxu0
        %v1206 = vadd.f32 %v555, %v1205
        %v1207 = vpop.f32.mrb[0].mxu0
        %1208 = vmatprep.mubr.f32.mxu0 0.0
        %1209 = vmatmul.mubr.f32.gmra.mrb[0].mxu0 %v612
        %v1210 = vpop.f32.mrb[0].mxu0
        %v1211 = vadd.f32 %v555, %v1210
        %v1212 = vpop.f32.mrb[0].mxu0
        %1213 = vmatprep.mubr.f32.mxu0 0.0
        %1214 = vmatmul.mubr.f32.gmra.mrb[0].mxu0 %v615
        %v1215 = vpop.f32.mrb[0].mxu0
        %v1216 = vadd.f32 %v555, %v1215
        %v1217 = vpop.f32.mrb[0].mxu0
        %1218 = vmatprep.mubr.f32.mxu0 0.0
        %1219 = vmatmul.mubr.f32.gmra.mrb[0].mxu0 %v618
        %v1220 = vpop.f32.mrb[0].mxu0
        %v1221 = vadd.f32 %v555, %v1220
        %v1222 = vpop.f32.mrb[0].mxu0
        %1223 = vmatprep.mubr.f32.mxu0 0.0
        %1224 = vmatmul.mubr.f32.gmra.mrb[0].mxu0 %v621
        %v1225 = vpop.f32.mrb[0].mxu0
        %v1226 = vadd.f32 %v555, %v1225
        %v1227 = vpop.f32.mrb[0].mxu0
        %1228 = vmatprep.mubr.f32.mxu0 0.0
        %1229 = vmatmul.mubr.f32.gmra.mrb[0].mxu0 %v624
        %v1230 = vpop.f32.mrb[0].mxu0
        %v1231 = vadd.f32 %v555, %v1230
        %v1232 = vpop.f32.mrb[0].mxu0
        %1233 = vmatprep.mubr.f32.mxu0 0.0
        %1234 = vmatmul.mubr.f32.gmra.mrb[0].mxu0 %v627
        %v1235 = vpop.f32.mrb[0].mxu0
        %v1236 = vadd.f32 %v555, %v1235
        %v1237 = vpop.f32.mrb[0].mxu0
        %1238 = vmatprep.mubr.f32.mxu0 0.0
        %1239 = vmatmul.mubr.f32.gmra.mrb[0].mxu0 %v630
        %v1240 = vpop.f32.mrb[0].mxu0
        %v1241 = vadd.f32 %v555, %v1240
        %v1242 = vpop.f32.mrb[0].mxu0
        %1243 = vmatprep.mubr.f32.mxu0 0.0
        %1244 = vmatmul.mubr.f32.gmra.mrb[0].mxu0 %v633
        %v1245 = vpop.f32.mrb[0].mxu0
        %v1246 = vadd.f32 %v555, %v1245
        %v1247 = vpop.f32.mrb[0].mxu0
        %1248 = vmatprep.mubr.f32.mxu0 0.0
        %1249 = vmatmul.mubr.f32.gmra.mrb[0].mxu0 %v636
        %v1250 = vpop.f32.mrb[0].mxu0
        %v1251 = vadd.f32 %v555, %v1250
        %v1252 = vpop.f32.mrb[0].mxu0
        %1253 = vmatprep.mubr.f32.mxu0 0.0
        %1254 = vmatmul.mubr.f32.gmra.mrb[0].mxu0 %v639
        %v1255 = vpop.f32.mrb[0].mxu0
        %v1256 = vadd.f32 %v555, %v1255
        %v1257 = vpop.f32.mrb[0].mxu0
        %1258 = vmatprep.mubr.f32.mxu0 0.0
        %1259 = vmatmul.mubr.f32.gmra.mrb[0].mxu0 %v642
        %v1260 = vpop.f32.mrb[0].mxu0
        %v1261 = vadd.f32 %v555, %v1260
        %v1262 = vpop.f32.mrb[0].mxu0
        %1263 = vmatprep.mubr.f32.mxu0 0.0
        %1264 = vmatmul.mubr.f32.gmra.mrb[0].mxu0 %v645
        %v1265 = vpop.f32.mrb[0].mxu0
        %v1266 = vadd.f32 %v555, %v1265
        %v1267 = vpop.f32.mrb[0].mxu0
        %1268 = vmatprep.mubr.f32.mxu0 0.0
        %1269 = vmatmul.mubr.f32.gmra.mrb[0].mxu0 %v648
        %v1270 = vpop.f32.mrb[0].mxu0
        %v1271 = vadd.f32 %v555, %v1270
        %v1272 = vpop.f32.mrb[0].mxu0
        %1273 = vmatprep.mubr.f32.mxu0 0.0
        %1274 = vmatmul.mubr.f32.gmra.mrb[0].mxu0 %v651
        %v1275 = vpop.f32.mrb[0].mxu0
        %v1276 = vadd.f32 %v555, %v1275
        %v1277 = vpop.f32.mrb[0].mxu0
        %1278 = vmatprep.mubr.f32.mxu0 0.0
        %1279 = vmatmul.mubr.f32.gmra.mrb[0].mxu0 %v654
        %v1280 = vpop.f32.mrb[0].mxu0
        %v1281 = vadd.f32 %v555, %v1280
        %v1282 = vpop.f32.mrb[0].mxu0
        %1283 = vmatprep.mubr.f32.mxu0 0.0
        %1284 = vmatmul.mubr.f32.gmra.mrb[0].mxu0 %v657
        %v1285 = vpop.f32.mrb[0].mxu0
        %v1286 = vadd.f32 %v555, %v1285
        %v1287 = vpop.f32.mrb[0].mxu0
        %1288 = vmatprep.mubr.f32.mxu0 0.0
        %1289 = vmatmul.mubr.f32.gmra.mrb[0].mxu0 %v660
        %v1290 = vpop.f32.mrb[0].mxu0
        %v1291 = vadd.f32 %v555, %v1290
        %v1292 = vpop.f32.mrb[0].mxu0
        %1293 = vmatprep.mubr.f32.mxu0 0.0
        %1294 = vmatmul.mubr.f32.gmra.mrb[0].mxu0 %v663
        %v1295 = vpop.f32.mrb[0].mxu0
        %v1296 = vadd.f32 %v555, %v1295
        %v1297 = vpop.f32.mrb[0].mxu0
        %1298 = vmatprep.mubr.f32.mxu0 0.0
        %1299 = vmatmul.mubr.f32.gmra.mrb[0].mxu0 %v666
        %v1300 = vpop.f32.mrb[0].mxu0
        %v1301 = vadd.f32 %v555, %v1300
        %v1302 = vpop.f32.mrb[0].mxu0
        %1303 = vmatprep.mubr.f32.mxu0 0.0
        %1304 = vmatmul.mubr.f32.gmra.mrb[0].mxu0 %v669
        %v1305 = vpop.f32.mrb[0].mxu0
        %v1306 = vadd.f32 %v555, %v1305
        %v1307 = vpop.f32.mrb[0].mxu0
        %1308 = vmatprep.mubr.f32.mxu0 0.0
        %1309 = vmatmul.mubr.f32.gmra.mrb[0].mxu0 %v672
        %v1310 = vpop.f32.mrb[0].mxu0
        %v1311 = vadd.f32 %v555, %v1310
        %v1312 = vpop.f32.mrb[0].mxu0
        %1313 = vmatprep.mubr.f32.mxu0 0.0
        %1314 = vmatmul.mubr.f32.gmra.mrb[0].mxu0 %v675
        %v1315 = vpop.f32.mrb[0].mxu0
        %v1316 = vadd.f32 %v555, %v1315
        %v1317 = vpop.f32.mrb[0].mxu0
        %1318 = vmatprep.mubr.f32.mxu0 0.0
        %1319 = vmatmul.mubr.f32.gmra.mrb[0].mxu0 %v678
        %v1320 = vpop.f32.mrb[0].mxu0
        %v1321 = vadd.f32 %v555, %v1320
        %v1322 = vpop.f32.mrb[0].mxu0
        %1323 = vmatprep.mubr.f32.mxu0 0.0
        %1324 = vmatmul.mubr.f32.gmra.mrb[0].mxu0 %v681
        %v1325 = vpop.f32.mrb[0].mxu0
        %v1326 = vadd.f32 %v555, %v1325
        %v1327 = vpop.f32.mrb[0].mxu0
        %1328 = vmatprep.mubr.f32.mxu0 0.0
        %1329 = vmatmul.mubr.f32.gmra.mrb[0].mxu0 %v684
        %v1330 = vpop.f32.mrb[0].mxu0
        %v1331 = vadd.f32 %v555, %v1330
        %v1332 = vpop.f32.mrb[0].mxu0
        %1333 = vmatprep.mubr.f32.mxu0 0.0
        %1334 = vmatmul.mubr.f32.gmra.mrb[0].mxu0 %v687
        %v1335 = vpop.f32.mrb[0].mxu0
        %v1336 = vadd.f32 %v555, %v1335
        %v1337 = vpop.f32.mrb[0].mxu0
        %1338 = vmatprep.mubr.f32.mxu0 0.0
        %1339 = vmatmul.mubr.f32.gmra.mrb[0].mxu0 %v690
        %v1340 = vpop.f32.mrb[0].mxu0
        %v1341 = vadd.f32 %v555, %v1340
        %v1342 = vpop.f32.mrb[0].mxu0
        %1343 = vmatprep.mubr.f32.mxu0 0.0
        %1344 = vmatmul.mubr.f32.gmra.mrb[0].mxu0 %v693
        %v1345 = vpop.f32.mrb[0].mxu0
        %v1346 = vadd.f32 %v555, %v1345
        %v1347 = vpop.f32.mrb[0].mxu0
        %1348 = vmatprep.mubr.f32.mxu0 0.0
        %1349 = vmatmul.mubr.f32.gmra.mrb[0].mxu0 %v696
        %v1350 = vpop.f32.mrb[0].mxu0
        %v1351 = vadd.f32 %v555, %v1350
        %v1352 = vpop.f32.mrb[0].mxu0
        %1353 = vmatprep.mubr.f32.mxu0 0.0
        %1354 = vmatmul.mubr.f32.gmra.mrb[0].mxu0 %v699
        %v1355 = vpop.f32.mrb[0].mxu0
        %v1356 = vadd.f32 %v555, %v1355
        %v1357 = vpop.f32.mrb[0].mxu0
        %1358 = vdwg.mxu0
        %1359 = vst [vmem:[%s236] sm:$0xff] %v768
        %1360 = vst [vmem:[%s236 + $0x8] sm:$0xff] %v770
        %1361 = vst [vmem:[%s236 + $0x10] sm:$0xff] %v1121
        %1362 = vst [vmem:[%s236 + $0x18] sm:$0xff] %v774
        %1363 = vst [vmem:[%s236 + $0x20] sm:$0xff] %v776
        %1364 = vst [vmem:[%s236 + $0x28] sm:$0xff] %v1126
        %1365 = vst [vmem:[%s236 + $0x30] sm:$0xff] %v780
        %1366 = vst [vmem:[%s236 + $0x38] sm:$0xff] %v782
        %1367 = vst [vmem:[%s236 + $0x40] sm:$0xff] %v1131
        %1368 = vst [vmem:[%s236 + $0x48] sm:$0xff] %v786
        %1369 = vst [vmem:[%s236 + $0x50] sm:$0xff] %v788
        %1370 = vst [vmem:[%s236 + $0x58] sm:$0xff] %v1136
        %1371 = vst [vmem:[%s236 + $0x60] sm:$0xff] %v792
        %1372 = vst [vmem:[%s236 + $0x68] sm:$0xff] %v794
        %1373 = vst [vmem:[%s236 + $0x70] sm:$0xff] %v1141
        %1374 = vst [vmem:[%s236 + $0x78] sm:$0xff] %v798
        %1375 = vst [vmem:[%s236 + $0x80] sm:$0xff] %v800
        %1376 = vst [vmem:[%s236 + $0x88] sm:$0xff] %v1146
        %1377 = vst [vmem:[%s236 + $0x90] sm:$0xff] %v804
        %1378 = vst [vmem:[%s236 + $0x98] sm:$0xff] %v806
        %1379 = vst [vmem:[%s236 + $0xa0] sm:$0xff] %v1151
        %1380 = vst [vmem:[%s236 + $0xa8] sm:$0xff] %v810
        %1381 = vst [vmem:[%s236 + $0xb0] sm:$0xff] %v812
        %1382 = vst [vmem:[%s236 + $0xb8] sm:$0xff] %v1156
        %1383 = vst [vmem:[%s236 + $0xc0] sm:$0xff] %v816
        %1384 = vst [vmem:[%s236 + $0xc8] sm:$0xff] %v818
        %1385 = vst [vmem:[%s236 + $0xd0] sm:$0xff] %v1161
        %1386 = vst [vmem:[%s236 + $0xd8] sm:$0xff] %v822
        %1387 = vst [vmem:[%s236 + $0xe0] sm:$0xff] %v824
        %1388 = vst [vmem:[%s236 + $0xe8] sm:$0xff] %v1166
        %1389 = vst [vmem:[%s236 + $0xf0] sm:$0xff] %v828
        %1390 = vst [vmem:[%s236 + $0xf8] sm:$0xff] %v830
        %1391 = vst [vmem:[%s236 + $0x100] sm:$0xff] %v1171
        %1392 = vst [vmem:[%s236 + $0x108] sm:$0xff] %v834
        %1393 = vst [vmem:[%s236 + $0x110] sm:$0xff] %v836
        %1394 = vst [vmem:[%s236 + $0x118] sm:$0xff] %v1176
        %1395 = vst [vmem:[%s236 + $0x120] sm:$0xff] %v840
        %1396 = vst [vmem:[%s236 + $0x128] sm:$0xff] %v842
        %1397 = vst [vmem:[%s236 + $0x130] sm:$0xff] %v1181
        %1398 = vst [vmem:[%s236 + $0x138] sm:$0xff] %v846
        %1399 = vst [vmem:[%s236 + $0x140] sm:$0xff] %v848
        %1400 = vst [vmem:[%s236 + $0x148] sm:$0xff] %v1186
        %1401 = vst [vmem:[%s236 + $0x150] sm:$0xff] %v852
        %1402 = vst [vmem:[%s236 + $0x158] sm:$0xff] %v854
        %1403 = vst [vmem:[%s236 + $0x160] sm:$0xff] %v1191
        %1404 = vst [vmem:[%s236 + $0x168] sm:$0xff] %v858
        %1405 = vst [vmem:[%s236 + $0x170] sm:$0xff] %v860
        %1406 = vst [vmem:[%s236 + $0x178] sm:$0xff] %v1196
        %1407 = vst [vmem:[%s236 + $0x180] sm:$0xff] %v864
        %1408 = vst [vmem:[%s236 + $0x188] sm:$0xff] %v866
        %1409 = vst [vmem:[%s236 + $0x190] sm:$0xff] %v1201
        %1410 = vst [vmem:[%s236 + $0x198] sm:$0xff] %v870
        %1411 = vst [vmem:[%s236 + $0x1a0] sm:$0xff] %v872
        %1412 = vst [vmem:[%s236 + $0x1a8] sm:$0xff] %v1206
        %1413 = vst [vmem:[%s236 + $0x1b0] sm:$0xff] %v876
        %1414 = vst [vmem:[%s236 + $0x1b8] sm:$0xff] %v878
        %1415 = vst [vmem:[%s236 + $0x1c0] sm:$0xff] %v1211
        %1416 = vst [vmem:[%s236 + $0x1c8] sm:$0xff] %v882
        %1417 = vst [vmem:[%s236 + $0x1d0] sm:$0xff] %v884
        %1418 = vst [vmem:[%s236 + $0x1d8] sm:$0xff] %v1216
        %1419 = vst [vmem:[%s236 + $0x1e0] sm:$0xff] %v888
        %1420 = vst [vmem:[%s236 + $0x1e8] sm:$0xff] %v890
        %1421 = vst [vmem:[%s236 + $0x1f0] sm:$0xff] %v1221
        %1422 = vst [vmem:[%s236 + $0x1f8] sm:$0xff] %v894
        %1423 = vst [vmem:[%s236 + $0x200] sm:$0xff] %v896
        %1424 = vst [vmem:[%s236 + $0x208] sm:$0xff] %v1226
        %1425 = vst [vmem:[%s236 + $0x210] sm:$0xff] %v900
        %1426 = vst [vmem:[%s236 + $0x218] sm:$0xff] %v902
        %1427 = vst [vmem:[%s236 + $0x220] sm:$0xff] %v1231
        %1428 = vst [vmem:[%s236 + $0x228] sm:$0xff] %v906
        %1429 = vst [vmem:[%s236 + $0x230] sm:$0xff] %v908
        %1430 = vst [vmem:[%s236 + $0x238] sm:$0xff] %v1236
        %1431 = vst [vmem:[%s236 + $0x240] sm:$0xff] %v912
        %1432 = vst [vmem:[%s236 + $0x248] sm:$0xff] %v914
        %1433 = vst [vmem:[%s236 + $0x250] sm:$0xff] %v1241
        %1434 = vst [vmem:[%s236 + $0x258] sm:$0xff] %v918
        %1435 = vst [vmem:[%s236 + $0x260] sm:$0xff] %v920
        %1436 = vst [vmem:[%s236 + $0x268] sm:$0xff] %v1246
        %1437 = vst [vmem:[%s236 + $0x270] sm:$0xff] %v924
        %1438 = vst [vmem:[%s236 + $0x278] sm:$0xff] %v926
        %1439 = vst [vmem:[%s236 + $0x280] sm:$0xff] %v1251
        %1440 = vst [vmem:[%s236 + $0x288] sm:$0xff] %v930
        %1441 = vst [vmem:[%s236 + $0x290] sm:$0xff] %v932
        %1442 = vst [vmem:[%s236 + $0x298] sm:$0xff] %v1256
        %1443 = vst [vmem:[%s236 + $0x2a0] sm:$0xff] %v936
        %1444 = vst [vmem:[%s236 + $0x2a8] sm:$0xff] %v938
        %1445 = vst [vmem:[%s236 + $0x2b0] sm:$0xff] %v1261
        %1446 = vst [vmem:[%s236 + $0x2b8] sm:$0xff] %v942
        %1447 = vst [vmem:[%s236 + $0x2c0] sm:$0xff] %v944
        %1448 = vst [vmem:[%s236 + $0x2c8] sm:$0xff] %v1266
        %1449 = vst [vmem:[%s236 + $0x2d0] sm:$0xff] %v948
        %1450 = vst [vmem:[%s236 + $0x2d8] sm:$0xff] %v950
        %1451 = vst [vmem:[%s236 + $0x2e0] sm:$0xff] %v1271
        %1452 = vst [vmem:[%s236 + $0x2e8] sm:$0xff] %v954
        %1453 = vst [vmem:[%s236 + $0x2f0] sm:$0xff] %v956
        %1454 = vst [vmem:[%s236 + $0x2f8] sm:$0xff] %v1276
        %1455 = vst [vmem:[%s236 + $0x300] sm:$0xff] %v960
        %1456 = vst [vmem:[%s236 + $0x308] sm:$0xff] %v962
        %1457 = vst [vmem:[%s236 + $0x310] sm:$0xff] %v1281
        %1458 = vst [vmem:[%s236 + $0x318] sm:$0xff] %v966
        %1459 = vst [vmem:[%s236 + $0x320] sm:$0xff] %v968
        %1460 = vst [vmem:[%s236 + $0x328] sm:$0xff] %v1286
        %1461 = vst [vmem:[%s236 + $0x330] sm:$0xff] %v972
        %1462 = vst [vmem:[%s236 + $0x338] sm:$0xff] %v974
        %1463 = vst [vmem:[%s236 + $0x340] sm:$0xff] %v1291
        %1464 = vst [vmem:[%s236 + $0x348] sm:$0xff] %v978
        %1465 = vst [vmem:[%s236 + $0x350] sm:$0xff] %v980
        %1466 = vst [vmem:[%s236 + $0x358] sm:$0xff] %v1296
        %1467 = vst [vmem:[%s236 + $0x360] sm:$0xff] %v984
        %1468 = vst [vmem:[%s236 + $0x368] sm:$0xff] %v986
        %1469 = vst [vmem:[%s236 + $0x370] sm:$0xff] %v1301
        %1470 = vst [vmem:[%s236 + $0x378] sm:$0xff] %v990
        %1471 = vst [vmem:[%s236 + $0x380] sm:$0xff] %v992
        %1472 = vst [vmem:[%s236 + $0x388] sm:$0xff] %v1306
        %1473 = vst [vmem:[%s236 + $0x390] sm:$0xff] %v996
        %1474 = vst [vmem:[%s236 + $0x398] sm:$0xff] %v998
        %1475 = vst [vmem:[%s236 + $0x3a0] sm:$0xff] %v1311
        %1476 = vst [vmem:[%s236 + $0x3a8] sm:$0xff] %v1002
        %1477 = vst [vmem:[%s236 + $0x3b0] sm:$0xff] %v1004
        %1478 = vst [vmem:[%s236 + $0x3b8] sm:$0xff] %v1316
        %1479 = vst [vmem:[%s236 + $0x3c0] sm:$0xff] %v1008
        %1480 = vst [vmem:[%s236 + $0x3c8] sm:$0xff] %v1010
        %1481 = vst [vmem:[%s236 + $0x3d0] sm:$0xff] %v1321
        %1482 = vst [vmem:[%s236 + $0x3d8] sm:$0xff] %v1014
        %1483 = vst [vmem:[%s236 + $0x3e0] sm:$0xff] %v1016
        %1484 = vst [vmem:[%s236 + $0x3e8] sm:$0xff] %v1326
        %1485 = vst [vmem:[%s236 + $0x3f0] sm:$0xff] %v1020
        %1486 = vst [vmem:[%s236 + $0x3f8] sm:$0xff] %v1022
        %1487 = vst [vmem:[%s236 + $0x400] sm:$0xff] %v1331
        %1488 = vst [vmem:[%s236 + $0x408] sm:$0xff] %v1026
        %1489 = vst [vmem:[%s236 + $0x410] sm:$0xff] %v1028
        %1490 = vst [vmem:[%s236 + $0x418] sm:$0xff] %v1336
        %1491 = vst [vmem:[%s236 + $0x420] sm:$0xff] %v1032
        %1492 = vst [vmem:[%s236 + $0x428] sm:$0xff] %v1034
        %1493 = vst [vmem:[%s236 + $0x430] sm:$0xff] %v1341
        %1494 = vst [vmem:[%s236 + $0x438] sm:$0xff] %v1038
        %1495 = vst [vmem:[%s236 + $0x440] sm:$0xff] %v1040
        %1496 = vst [vmem:[%s236 + $0x448] sm:$0xff] %v1346
        %1497 = vst [vmem:[%s236 + $0x450] sm:$0xff] %v1044
        %1498 = vst [vmem:[%s236 + $0x458] sm:$0xff] %v1046
        %1499 = vst [vmem:[%s236 + $0x460] sm:$0xff] %v1351
        %1500 = vst [vmem:[%s236 + $0x468] sm:$0xff] %v1050
        %1501 = vst [vmem:[%s236 + $0x470] sm:$0xff] %v1052
        %1502 = vst [vmem:[%s236 + $0x478] sm:$0xff] %v1356
        %s1503 = sand.u32 %s136, 1
        %s1504 = scalar_lea.sflag [#allocation5], %s1503
        %s1505 = sand.u32 %s136, 1
        %s1506 = smul.addr %s1505, 1152
        %s1507 = scalar_lea.vmem [#allocation6], %s1506
        // Predicated region
        $region41: #{tpu_custom_call.1} parent=35 // pred_check
          %p1508 = pneg %p146
        $region42: #{tpu_custom_call.1} parent=35 // pred_check_branch
          %1510 = sbr.rel (%p1508) target = $region44
        $region43: #{tpu_custom_call.1} parent=35 // pred_region
          %s1511 = smul.u32 48, %s25
          %s1513 = ssub.s32 18432, 18432
          %1514 = vsyncadd %s1504, %s1513
          %s1515 = smul.addr %s1511, 3
          %s1516 = smul.addr %s24, 144
          %s1517 = sadd.s32 %s1515, %s1516
          %s1518 = smul.addr %s1517, 128
          %s1519 = scalar_lea.hbm %s4, %s1518
          %s1520 = sshll.u32 %s1507, 4
          %s1521 = int_to_ptr.vmem [resolvable:$true] %s1520
          %1526 = dma.vmem_to_hbm [thread:$0]  %s1521, 18432, %s1519, %s1504, 384, 384, 24
        $region44: #{tpu_custom_call.1} parent=35 // pred_fallthru
          _
      $region36: #{tpu_custom_call.1} parent=5 // pred_fallthru
        _
      %p1527 = scmp.le.s32.totalorder 2, %s15
      // Predicated region
      $region45: #{tpu_custom_call.1} parent=5 // pred_check
        %p1528 = pneg %p1527
      $region46: #{tpu_custom_call.1} parent=5 // pred_check_branch
        %1530 = sbr.rel (%p1528) target = $region48
      $region47: #{tpu_custom_call.1} parent=5 // pred_region
        %s1531 = ssub.s32 %s15, 2
        // Predicated region
        $region49: #{tpu_custom_call.1} parent=47 // pred_check
          %p1532 = pneg %p152
        $region50: #{tpu_custom_call.1} parent=47 // pred_check_branch
          %1534 = sbr.rel (%p1532) target = $region52
        $region51: #{tpu_custom_call.1} parent=47 // pred_region
          %s1535 = sand.u32 %s137, 1
          %s1536 = scalar_lea.sflag [#allocation5], %s1535
          %s1537 = sand.u32 %s137, 1
          %s1538 = smul.addr %s1537, 1152
          %s1539 = scalar_lea.vmem [#allocation6], %s1538
          %1540 = dma.done %s1536, 18432
        $region52: #{tpu_custom_call.1} parent=47 // pred_fallthru
          _
      $region48: #{tpu_custom_call.1} parent=5 // pred_fallthru
        _
    $region6: #{tpu_custom_call.1} parent=1 // loop_footer
      %s19 = sadd.s32 1, %s15
    $region7: #{tpu_custom_call.1} parent=1 // loop_footer_branch
      %14 = sbr.rel target = $region3
    $region8: #{tpu_custom_call.1} parent=1 // loop_exit
      _
    %1541 = vsyncpa [#allocation4], 1
    %s1542 = scalar_lea.sflag [#allocation4], 1
    %1543 = vsyncpa %s1542, 1
    %1544 = vsyncpa [#allocation5], 1
    %s1545 = scalar_lea.sflag [#allocation5], 1
    %1546 = vsyncpa %s1545, 1

</llo_original>
